<compile_context>
chip_gen: v7x
topology: tpu7x:2x2x1
jax: 0.10.0
libtpu: 0.0.40
codegen_flags: <defaults>
</compile_context>

<pallas_src>
import functools

import jax
import jax.numpy as jnp
from jax.experimental import pallas as pl
from jax.experimental.pallas import tpu as pltpu

# ------------------------- model dimensions (small) -------------------------
B, C, S, P, F = 2, 4, 6, 16, 32          # batch, channels, seq, patch, feature
D0 = C * S * F                           # flattened_size (= 18*30*800 in orig)
H1, H2, H3 = 10 * F, 5 * F, F            # classifier hidden sizes

_ROW_TILE = 256                          # row tile target for the token layer


# --------------------------- per-generation policy --------------------------
def _tpu_policy():
    """(scoped vmem limit, weight-tile byte target, weight buffer depth,
    whether to split the output-feature axis for the second TensorCore)."""
    vmem_phys = None
    kind = ""
    try:
        vmem_phys = int(pltpu.get_tpu_info().vmem_capacity_bytes)
    except Exception:
        vmem_phys = None
    try:
        kind = jax.devices()[0].device_kind.lower()
    except Exception:
        pass
    is_v7 = ("v7" in kind) or (vmem_phys is not None and vmem_phys <= 64 * 1024 * 1024)
    if is_v7:
        # 64 MiB physical VMEM, 2 TensorCores: double (not triple) buffering,
        # <=48 MiB scoped working set, split N so both cores stream weights.
        return dict(vmem_limit=48 << 20, w_tile_bytes=10 << 20, buffers=2, split_n=True)
    if "v5" in kind:
        # ~820 GB/s HBM: step overhead is <5% of the stream; modest tiles,
        # 3-deep weight pipeline.
        return dict(vmem_limit=32 << 20, w_tile_bytes=8 << 20, buffers=3, split_n=False)
    # v6e (default): 128 MiB physical VMEM; big weight tiles cut the per-step
    # (~0.35 us) overhead on the weight stream by ~3x.
    return dict(vmem_limit=96 << 20, w_tile_bytes=24 << 20, buffers=2, split_n=False)


_POLICY = _tpu_policy()


# --------------------------------- helpers ----------------------------------
def _round_up(n, m):
    return ((n + m - 1) // m) * m


def _lane_pad_dim(n):
    """Pad a feature dim up to a multiple of 128 lanes (dims <= 128 are left
    alone — a full-extent block is always legal)."""
    return n if (n <= 128 or n % 128 == 0) else _round_up(n, 128)


def _pad_to(a, axis, size):
    pad = size - a.shape[axis]
    if pad == 0:
        return a
    widths = [(0, 0)] * a.ndim
    widths[axis] = (0, pad)
    return jnp.pad(a, widths)


def _elu(x):
    # nn.ELU(alpha=1): x if x > 0 else exp(x) - 1  (computed in f32)
    return jnp.where(x > 0, x, jnp.exp(jnp.minimum(x, 0.0)) - 1.0)


def _pick_tile(dim, target, granule=128):
    """Largest multiple of `granule` that divides `dim` and is <= target;
    explicit fallback is the full dim (a full-extent block is always legal)."""
    if dim <= target or dim % granule != 0:
        return dim
    t = (min(target, dim) // granule) * granule
    while t >= granule:
        if dim % t == 0:
            return t
        t -= granule
    return dim


def _weight_spec(shape, index_map, n_k, buffers):
    """BlockSpec for the streamed weight operand.  Only request >2-deep
    buffering (v5e) when there are enough K steps to pipeline; default
    double-buffering otherwise (v6e/v7x)."""
    if buffers > 2 and n_k >= buffers and hasattr(pl, "Buffered"):
        try:
            return pl.BlockSpec(shape, index_map, pipeline_mode=pl.Buffered(buffers))
        except TypeError:  # older BlockSpec without pipeline_mode kwarg
            pass
    return pl.BlockSpec(shape, index_map)


def _assert_vmem_fit(name, *, tm, tn, tk, w_buffers, x_itemsize, out_itemsize,
                     vmem_limit, extra=0):
    """Trace-time check that the chosen tiles fit the scoped VMEM budget."""
    w_bytes = tk * tn * 2 * w_buffers          # bf16 weight tiles
    x_bytes = tm * tk * x_itemsize * 2         # double-buffered activation tiles
    o_bytes = tm * tn * out_itemsize * 2       # double-buffered output tiles
    acc_bytes = tm * tn * 4                    # f32 accumulator scratch
    b_bytes = tn * 4 * 2
    total = w_bytes + x_bytes + o_bytes + acc_bytes + b_bytes + extra
    assert total <= vmem_limit, (
        f"{name}: VMEM working set {total / 2**20:.1f} MiB exceeds scoped limit "
        f"{vmem_limit / 2**20:.1f} MiB (tm={tm}, tn={tn}, tk={tk})")


# ------------------------ generic tiled Linear (+ELU) -----------------------
def _linear_kernel(x_ref, w_ref, b_ref, o_ref, acc_ref, *, apply_elu):
    k = pl.program_id(2)

    @pl.when(k == 0)
    def _():
        acc_ref[...] = jnp.zeros_like(acc_ref)

    acc_ref[...] += jnp.dot(x_ref[...], w_ref[...],
                            preferred_element_type=jnp.float32)

    @pl.when(k == pl.num_programs(2) - 1)
    def _():
        h = acc_ref[...] + b_ref[...]
        if apply_elu:
            h = _elu(h)
        o_ref[...] = h.astype(o_ref.dtype)


def tiled_linear(x, w, b, *, apply_elu, out_dtype=jnp.float32):
    """out = [ELU](x @ w + b), K-last grid, f32 VMEM accumulator, bf16 weight
    streaming.  Weights/bias are expected pre-padded & pre-cast at init."""
    M, K = x.shape
    Kw, N = w.shape
    assert K == Kw, (K, Kw)
    assert b.shape == (1, N)
    if x.dtype != w.dtype:            # no-op on the classifier chain
        x = x.astype(w.dtype)

    # Row tiling: only ever triggers on the (small) token path; classifier
    # layers have M = batch <= _ROW_TILE so tm = M (full extent).
    if M > _ROW_TILE:
        tm = _ROW_TILE
        Mp = _round_up(M, tm)
        x = _pad_to(x, 0, Mp)
    else:
        tm, Mp = M, M

    # Output-feature tiling: full-N single contiguous DMA on 1-TC chips;
    # N/2 on v7x so both TensorCores stream weights concurrently.
    if _POLICY["split_n"] and N % 256 == 0:
        tn = N // 2
    else:
        tn = N
    assert tn == N or (N % tn == 0 and tn % 128 == 0)

    # Reduction tiling: biggest divisor of K (multiple of 128) whose bf16
    # weight tile hits the per-generation byte target.
    target_rows = max(128, _POLICY["w_tile_bytes"] // (tn * w.dtype.itemsize))
    tk = _pick_tile(K, target_rows, 128)
    assert K % tk == 0 and (tk == K or tk % 128 == 0)
    n_k = K // tk

    _assert_vmem_fit("tiled_linear", tm=tm, tn=tn, tk=tk,
                     w_buffers=max(2, _POLICY["buffers"]),
                     x_itemsize=x.dtype.itemsize,
                     out_itemsize=jnp.dtype(out_dtype).itemsize,
                     vmem_limit=_POLICY["vmem_limit"])

    grid = (Mp // tm, N // tn, n_k)
    out = pl.pallas_call(
        functools.partial(_linear_kernel, apply_elu=apply_elu),
        out_shape=jax.ShapeDtypeStruct((Mp, N), out_dtype),
        grid=grid,
        in_specs=[
            pl.BlockSpec((tm, tk), lambda i, j, k: (i, k)),
            _weight_spec((tk, tn), lambda i, j, k: (k, j), n_k, _POLICY["buffers"]),
            pl.BlockSpec((1, tn), lambda i, j, k: (0, j)),
        ],
        out_specs=pl.BlockSpec((tm, tn), lambda i, j, k: (i, j)),
        scratch_shapes=[pltpu.VMEM((tm, tn), jnp.float32)],
        compiler_params=pltpu.CompilerParams(
            dimension_semantics=("parallel", "parallel", "arbitrary"),
            vmem_limit_bytes=_POLICY["vmem_limit"]),
    )(x, w, b)
    return out[:M] if Mp != M else out


# ------------- fused head: Linear(H2->H3) + ELU + Linear(H3->1) -------------
def _head_kernel(x_ref, w3_ref, b3_ref, w4_ref, b4_ref, o_ref, acc_ref):
    k = pl.program_id(1)

    @pl.when(k == 0)
    def _():
        acc_ref[...] = jnp.zeros_like(acc_ref)

    acc_ref[...] += jnp.dot(x_ref[...], w3_ref[...],
                            preferred_element_type=jnp.float32)

    @pl.when(k == pl.num_programs(1) - 1)
    def _():
        h = _elu(acc_ref[...] + b3_ref[...])
        # Final Linear(H3 -> 1) as a lane reduction (XLU), not an N=1 MXU
        # matmul; the sub-128-lane store happens once, at the final K step.
        o_ref[...] = (jnp.sum(h * w4_ref[...], axis=-1, keepdims=True)
                      + b4_ref[0, 0]).astype(o_ref.dtype)


def classifier_head(x, w3, b3, w4, b4):
    M, K = x.shape
    Kw, H = w3.shape
    assert K == Kw, (K, Kw)
    if x.dtype != w3.dtype:           # no-op: h2 is already bf16
        x = x.astype(w3.dtype)

    if M > _ROW_TILE:
        tm = _ROW_TILE
        Mp = _round_up(M, tm)
        x = _pad_to(x, 0, Mp)
    else:
        tm, Mp = M, M

    target_rows = max(128, _POLICY["w_tile_bytes"] // (H * w3.dtype.itemsize))
    tk = _pick_tile(K, target_rows, 128)
    assert K % tk == 0 and (tk == K or tk % 128 == 0)
    n_k = K // tk

    _assert_vmem_fit("classifier_head", tm=tm, tn=H, tk=tk,
                     w_buffers=max(2, _POLICY["buffers"]),
                     x_itemsize=x.dtype.itemsize, out_itemsize=4,
                     vmem_limit=_POLICY["vmem_limit"],
                     extra=H * 4 * 2)

    grid = (Mp // tm, n_k)
    out = pl.pallas_call(
        _head_kernel,
        out_shape=jax.ShapeDtypeStruct((Mp, 1), jnp.float32),
        grid=grid,
        in_specs=[
            pl.BlockSpec((tm, tk), lambda i, k: (i, k)),
            _weight_spec((tk, H), lambda i, k: (k, 0), n_k, _POLICY["buffers"]),
            pl.BlockSpec((1, H), lambda i, k: (0, 0)),
            pl.BlockSpec((1, H), lambda i, k: (0, 0)),
            # scalar bias in SMEM — avoids a padded (8,128) VMEM tile
            pl.BlockSpec(memory_space=pltpu.MemorySpace.SMEM),
        ],
        out_specs=pl.BlockSpec((tm, 1), lambda i, k: (i, 0)),
        scratch_shapes=[pltpu.VMEM((tm, H), jnp.float32)],
        compiler_params=pltpu.CompilerParams(
            dimension_semantics=("parallel", "arbitrary"),
            vmem_limit_bytes=_POLICY["vmem_limit"]),
    )(x, w3, b3, w4, b4)
    return out[:M] if Mp != M else out


# ------------------------------- forward pass -------------------------------
def model_forward(x, params):
    bz, ch, seq, patch = x.shape
    # Backbone stand-in: per-token patch-embedding Linear(P -> F).
    tokens = x.reshape(bz * ch * seq, patch).astype(params["w_patch"].dtype)
    kp = params["w_patch"].shape[0]
    if tokens.shape[1] != kp:        # only at real dims (P=200 -> 256); tiny
        tokens = _pad_to(tokens, 1, kp)
    feats = tiled_linear(tokens, params["w_patch"], params["b_patch"],
                         apply_elu=False, out_dtype=jnp.bfloat16)      # (T, F)
    # == feats.contiguous().view(bz, ch*seq*F)
    flat = feats.reshape(bz, ch * seq * feats.shape[-1])
    # [Linear -> ELU -> Dropout(identity)] x 2, tiled, bf16 weight streaming.
    h1 = tiled_linear(flat, params["w1"], params["b1"],
                      apply_elu=True, out_dtype=jnp.bfloat16)
    h2 = tiled_linear(h1, params["w2"], params["b2"],
                      apply_elu=True, out_dtype=jnp.bfloat16)
    # Fused Linear(H2->H3) + ELU + Linear(H3->1).
    return classifier_head(h2, params["w3"], params["b3"],
                           params["w4"], params["b4"])                 # (B, 1)


# ------------------------- deterministic parameter init ---------------------
def init_params(key):
    """Weights stored pre-transposed as (in, out), pre-cast to bf16 and
    pre-padded ONCE here (never inside the jitted forward).  Hidden dims are
    zero-padded to lane multiples; padded bias columns are zero and the next
    layer's padded weight rows are zero, so ELU(0)=0 flows through and the
    math is exactly unchanged."""
    h1p, h2p = _lane_pad_dim(H1), _lane_pad_dim(H2)
    pp = _lane_pad_dim(P)

    def linear(k, fan_in, fan_out, k_pad, n_pad):
        kw, kb = jax.random.split(k)
        bound = 1.0 / jnp.sqrt(jnp.float32(fan_in))
        w = jax.random.uniform(kw, (fan_in, fan_out), jnp.float32, -bound, bound)
        b = jax.random.uniform(kb, (1, fan_out), jnp.float32, -bound, bound)
        w = _pad_to(_pad_to(w, 0, k_pad), 1, n_pad).astype(jnp.bfloat16)
        b = _pad_to(b, 1, n_pad)     # bias stays f32; zeros in padded columns
        return w, b

    keys = jax.random.split(key, 5)
    params = {}
    params["w_patch"], params["b_patch"] = linear(keys[0], P, F, pp, F)
    params["w1"], params["b1"] = linear(keys[1], D0, H1, D0, h1p)
    params["w2"], params["b2"] = linear(keys[2], H1, H2, h1p, h2p)
    params["w3"], params["b3"] = linear(keys[3], H2, H3, h2p, H3)
    kw, kb = jax.random.split(keys[4])
    bound = 1.0 / jnp.sqrt(jnp.float32(H3))
    params["w4"] = jax.random.uniform(kw, (1, H3), jnp.float32, -bound, bound)
    params["b4"] = jax.random.uniform(kb, (1, 1), jnp.float32, -bound, bound)
    return params


# -------------------- pure-JAX reference (same dtypes) -----------------------
def reference_forward(x, params):
    bz = x.shape[0]
    tokens = x.reshape(-1, x.shape[-1]).astype(params["w_patch"].dtype)
    kp = params["w_patch"].shape[0]
    if tokens.shape[1] != kp:
        tokens = _pad_to(tokens, 1, kp)

    def lin(a, w, b, elu):
        h = jnp.dot(a, w, preferred_element_type=jnp.float32) + b
        return _elu(h) if elu else h

    feats = lin(tokens, params["w_patch"], params["b_patch"], False).astype(jnp.bfloat16)
    flat = feats.reshape(bz, -1)
    h1 = lin(flat, params["w1"], params["b1"], True).astype(jnp.bfloat16)
    h2 = lin(h1, params["w2"], params["b2"], True).astype(jnp.bfloat16)
    h3 = lin(h2, params["w3"], params["b3"], True)
    return jnp.sum(h3 * params["w4"], axis=-1, keepdims=True) + params["b4"]


if __name__ == "__main__":
    key = jax.random.PRNGKey(0)
    pkey, xkey = jax.random.split(key)
    params = init_params(pkey)
    x = jax.random.normal(xkey, (B, C, S, P), dtype=jnp.float32)

    out = jax.jit(model_forward)(x, params)
    out = jax.block_until_ready(out)
    assert out.shape == (B, 1) and out.dtype == jnp.float32
    assert bool(jnp.all(jnp.isfinite(out)))

    ref = reference_forward(x, params)
    assert bool(jnp.allclose(out, ref, atol=2e-2, rtol=2e-2)), (out, ref)
    print("KERNEL_OK")
</pallas_src>

<mosaic_0001>
module attributes {stable_mosaic.version = 11 : i64} {
  func.func @_linear_kernel(%arg0: i32, %arg1: i32, %arg2: i32, %arg3: memref<48x16xbf16, #tpu.memory_space<vmem>>, %arg4: memref<16x32xbf16, #tpu.memory_space<vmem>>, %arg5: memref<1x32xf32, #tpu.memory_space<vmem>>, %arg6: memref<48x32xbf16, #tpu.memory_space<vmem>>, %arg7: memref<48x32xf32, #tpu.memory_space<vmem>>) attributes {dimension_semantics = [#tpu.dimension_semantics<parallel>, #tpu.dimension_semantics<parallel>, #tpu.dimension_semantics<arbitrary>], iteration_bounds = array<i64: 1, 1, 1>, scalar_prefetch = 0 : i64, scratch_operands = 1 : i64, tpu.core_type = #tpu.core_type<tc>, window_params = [{transform_indices = @transform_0, window_bounds = array<i64: 48, 16>}, {transform_indices = @transform_1, window_bounds = array<i64: 16, 32>}, {transform_indices = @transform_2, window_bounds = array<i64: 1, 32>}, {transform_indices = @transform_3, window_bounds = array<i64: 48, 32>}]} {
    %c0_i32 = arith.constant 0 : i32
    %0 = arith.cmpi eq, %arg2, %c0_i32 : i32
    %1 = arith.extui %0 : i1 to i32
    %c0_i32_0 = arith.constant 0 : i32
    %2 = arith.cmpi ne, %1, %c0_i32_0 : i32
    scf.if %2 {
      %cst_10 = arith.constant 0.000000e+00 : f32
      %12 = vector.broadcast %cst_10 : f32 to vector<48x32xf32>
      %c0_11 = arith.constant 0 : index
      %c0_12 = arith.constant 0 : index
      %13 = vector.load %arg7[%c0_11, %c0_12] : memref<48x32xf32, #tpu.memory_space<vmem>>, vector<48x32xf32>
      tpu.vector_store %arg7[%c0_11, %c0_12], %12 {strides = array<i32>} : memref<48x32xf32, #tpu.memory_space<vmem>>, vector<48x32xf32>,
    } else {
    }
    %c0 = arith.constant 0 : index
    %c0_1 = arith.constant 0 : index
    %3 = vector.load %arg7[%c0, %c0_1] : memref<48x32xf32, #tpu.memory_space<vmem>>, vector<48x32xf32>
    %c0_2 = arith.constant 0 : index
    %c0_3 = arith.constant 0 : index
    %4 = vector.load %arg3[%c0_2, %c0_3] : memref<48x16xbf16, #tpu.memory_space<vmem>>, vector<48x16xbf16>
    %c0_4 = arith.constant 0 : index
    %c0_5 = arith.constant 0 : index
    %5 = vector.load %arg4[%c0_4, %c0_5] : memref<16x32xbf16, #tpu.memory_space<vmem>>, vector<16x32xbf16>
    %cst = arith.constant dense<0.000000e+00> : vector<48x32xf32>
    %6 = tpu.matmul %4, %5, %cst {dimension_numbers = #tpu.dot_dimension_numbers<[1], [0], [0], [1], [0, 0, 1, 1], [], []>} : vector<48x16xbf16>, vector<16x32xbf16>, vector<48x32xf32> -> vector<48x32xf32>
    %7 = arith.addf %3, %6 : vector<48x32xf32>
    %c0_6 = arith.constant 0 : index
    %c0_7 = arith.constant 0 : index
    %8 = vector.load %arg7[%c0_6, %c0_7] : memref<48x32xf32, #tpu.memory_space<vmem>>, vector<48x32xf32>
    tpu.vector_store %arg7[%c0_6, %c0_7], %7 {strides = array<i32>} : memref<48x32xf32, #tpu.memory_space<vmem>>, vector<48x32xf32>,
    %c0_i32_8 = arith.constant 0 : i32
    %9 = arith.cmpi eq, %arg2, %c0_i32_8 : i32
    %10 = arith.extui %9 : i1 to i32
    %c0_i32_9 = arith.constant 0 : i32
    %11 = arith.cmpi ne, %10, %c0_i32_9 : i32
    scf.if %11 {
      %c0_10 = arith.constant 0 : index
      %c0_11 = arith.constant 0 : index
      %12 = vector.load %arg7[%c0_10, %c0_11] : memref<48x32xf32, #tpu.memory_space<vmem>>, vector<48x32xf32>
      %c0_12 = arith.constant 0 : index
      %c0_13 = arith.constant 0 : index
      %13 = vector.load %arg5[%c0_12, %c0_13] : memref<1x32xf32, #tpu.memory_space<vmem>>, vector<1x32xf32>
      %14 = vector.broadcast %13 : vector<1x32xf32> to vector<48x32xf32>
      %15 = arith.addf %12, %14 : vector<48x32xf32>
      %16 = arith.truncf %15 : vector<48x32xf32> to vector<48x32xbf16>
      %c0_14 = arith.constant 0 : index
      %c0_15 = arith.constant 0 : index
      %17 = vector.load %arg6[%c0_14, %c0_15] : memref<48x32xbf16, #tpu.memory_space<vmem>>, vector<48x32xbf16>
      tpu.vector_store %arg6[%c0_14, %c0_15], %16 {strides = array<i32>} : memref<48x32xbf16, #tpu.memory_space<vmem>>, vector<48x32xbf16>,
    } else {
    }
    return
  }
  func.func @transform_0(%arg0: i32, %arg1: i32, %arg2: i32) -> (i32, i32) {
    %c0_i32 = arith.constant 0 : i32
    return %arg0, %arg2 : i32, i32
  }
  func.func @transform_1(%arg0: i32, %arg1: i32, %arg2: i32) -> (i32, i32) {
    %c0_i32 = arith.constant 0 : i32
    return %arg2, %arg1 : i32, i32
  }
  func.func @transform_2(%arg0: i32, %arg1: i32, %arg2: i32) -> (i32, i32) {
    %c0_i32 = arith.constant 0 : i32
    %c0_i32_0 = arith.constant 0 : i32
    return %c0_i32, %arg1 : i32, i32
  }
  func.func @transform_3(%arg0: i32, %arg1: i32, %arg2: i32) -> (i32, i32) {
    %c0_i32 = arith.constant 0 : i32
    return %arg0, %arg1 : i32, i32
  }
}

module attributes {stable_mosaic.version = 11 : i64} {
  func.func @_linear_kernel(%arg0: i32, %arg1: i32, %arg2: i32, %arg3: memref<2x768xbf16, #tpu.memory_space<vmem>>, %arg4: memref<768x384xbf16, #tpu.memory_space<vmem>>, %arg5: memref<1x384xf32, #tpu.memory_space<vmem>>, %arg6: memref<2x384xbf16, #tpu.memory_space<vmem>>, %arg7: memref<2x384xf32, #tpu.memory_space<vmem>>) attributes {dimension_semantics = [#tpu.dimension_semantics<parallel>, #tpu.dimension_semantics<parallel>, #tpu.dimension_semantics<arbitrary>], iteration_bounds = array<i64: 1, 1, 1>, scalar_prefetch = 0 : i64, scratch_operands = 1 : i64, tpu.core_type = #tpu.core_type<tc>, window_params = [{transform_indices = @transform_0, window_bounds = array<i64: 2, 768>}, {transform_indices = @transform_1, window_bounds = array<i64: 768, 384>}, {transform_indices = @transform_2, window_bounds = array<i64: 1, 384>}, {transform_indices = @transform_3, window_bounds = array<i64: 2, 384>}]} {
    %c0_i32 = arith.constant 0 : i32
    %0 = arith.cmpi eq, %arg2, %c0_i32 : i32
    %1 = arith.extui %0 : i1 to i32
    %c0_i32_0 = arith.constant 0 : i32
    %2 = arith.cmpi ne, %1, %c0_i32_0 : i32
    scf.if %2 {
      %cst_10 = arith.constant 0.000000e+00 : f32
      %12 = vector.broadcast %cst_10 : f32 to vector<2x384xf32>
      %c0_11 = arith.constant 0 : index
      %c0_12 = arith.constant 0 : index
      %13 = vector.load %arg7[%c0_11, %c0_12] : memref<2x384xf32, #tpu.memory_space<vmem>>, vector<2x384xf32>
      tpu.vector_store %arg7[%c0_11, %c0_12], %12 {strides = array<i32>} : memref<2x384xf32, #tpu.memory_space<vmem>>, vector<2x384xf32>,
    } else {
    }
    %c0 = arith.constant 0 : index
    %c0_1 = arith.constant 0 : index
    %3 = vector.load %arg7[%c0, %c0_1] : memref<2x384xf32, #tpu.memory_space<vmem>>, vector<2x384xf32>
    %c0_2 = arith.constant 0 : index
    %c0_3 = arith.constant 0 : index
    %4 = vector.load %arg3[%c0_2, %c0_3] : memref<2x768xbf16, #tpu.memory_space<vmem>>, vector<2x768xbf16>
    %c0_4 = arith.constant 0 : index
    %c0_5 = arith.constant 0 : index
    %5 = vector.load %arg4[%c0_4, %c0_5] : memref<768x384xbf16, #tpu.memory_space<vmem>>, vector<768x384xbf16>
    %cst = arith.constant dense<0.000000e+00> : vector<2x384xf32>
    %6 = tpu.matmul %4, %5, %cst {dimension_numbers = #tpu.dot_dimension_numbers<[1], [0], [0], [1], [0, 0, 1, 1], [], []>} : vector<2x768xbf16>, vector<768x384xbf16>, vector<2x384xf32> -> vector<2x384xf32>
    %7 = arith.addf %3, %6 : vector<2x384xf32>
    %c0_6 = arith.constant 0 : index
    %c0_7 = arith.constant 0 : index
    %8 = vector.load %arg7[%c0_6, %c0_7] : memref<2x384xf32, #tpu.memory_space<vmem>>, vector<2x384xf32>
    tpu.vector_store %arg7[%c0_6, %c0_7], %7 {strides = array<i32>} : memref<2x384xf32, #tpu.memory_space<vmem>>, vector<2x384xf32>,
    %c0_i32_8 = arith.constant 0 : i32
    %9 = arith.cmpi eq, %arg2, %c0_i32_8 : i32
    %10 = arith.extui %9 : i1 to i32
    %c0_i32_9 = arith.constant 0 : i32
    %11 = arith.cmpi ne, %10, %c0_i32_9 : i32
    scf.if %11 {
      %c0_10 = arith.constant 0 : index
      %c0_11 = arith.constant 0 : index
      %12 = vector.load %arg7[%c0_10, %c0_11] : memref<2x384xf32, #tpu.memory_space<vmem>>, vector<2x384xf32>
      %c0_12 = arith.constant 0 : index
      %c0_13 = arith.constant 0 : index
      %13 = vector.load %arg5[%c0_12, %c0_13] : memref<1x384xf32, #tpu.memory_space<vmem>>, vector<1x384xf32>
      %14 = vector.broadcast %13 : vector<1x384xf32> to vector<2x384xf32>
      %15 = arith.addf %12, %14 : vector<2x384xf32>
      %cst_14 = arith.constant 0.000000e+00 : f32
      %16 = vector.broadcast %cst_14 : f32 to vector<2x384xf32>
      %17 = arith.cmpf ogt, %15, %16 : vector<2x384xf32>
      %cst_15 = arith.constant 0.000000e+00 : f32
      %18 = vector.broadcast %cst_15 : f32 to vector<2x384xf32>
      %19 = arith.minimumf %15, %18 : vector<2x384xf32>
      %20 = math.exp %19 : vector<2x384xf32>
      %cst_16 = arith.constant 1.000000e+00 : f32
      %21 = vector.broadcast %cst_16 : f32 to vector<2x384xf32>
      %22 = arith.subf %20, %21 : vector<2x384xf32>
      %23 = arith.select %17, %15, %22 : vector<2x384xi1>, vector<2x384xf32>
      %24 = arith.truncf %23 : vector<2x384xf32> to vector<2x384xbf16>
      %c0_17 = arith.constant 0 : index
      %c0_18 = arith.constant 0 : index
      %25 = vector.load %arg6[%c0_17, %c0_18] : memref<2x384xbf16, #tpu.memory_space<vmem>>, vector<2x384xbf16>
      tpu.vector_store %arg6[%c0_17, %c0_18], %24 {strides = array<i32>} : memref<2x384xbf16, #tpu.memory_space<vmem>>, vector<2x384xbf16>,
    } else {
    }
    return
  }
  func.func @transform_0(%arg0: i32, %arg1: i32, %arg2: i32) -> (i32, i32) {
    %c0_i32 = arith.constant 0 : i32
    return %arg0, %arg2 : i32, i32
  }
  func.func @transform_1(%arg0: i32, %arg1: i32, %arg2: i32) -> (i32, i32) {
    %c0_i32 = arith.constant 0 : i32
    return %arg2, %arg1 : i32, i32
  }
  func.func @transform_2(%arg0: i32, %arg1: i32, %arg2: i32) -> (i32, i32) {
    %c0_i32 = arith.constant 0 : i32
    %c0_i32_0 = arith.constant 0 : i32
    return %c0_i32, %arg1 : i32, i32
  }
  func.func @transform_3(%arg0: i32, %arg1: i32, %arg2: i32) -> (i32, i32) {
    %c0_i32 = arith.constant 0 : i32
    return %arg0, %arg1 : i32, i32
  }
}

module attributes {stable_mosaic.version = 11 : i64} {
  func.func @_linear_kernel(%arg0: i32, %arg1: i32, %arg2: i32, %arg3: memref<2x384xbf16, #tpu.memory_space<vmem>>, %arg4: memref<384x256xbf16, #tpu.memory_space<vmem>>, %arg5: memref<1x256xf32, #tpu.memory_space<vmem>>, %arg6: memref<2x256xbf16, #tpu.memory_space<vmem>>, %arg7: memref<2x256xf32, #tpu.memory_space<vmem>>) attributes {dimension_semantics = [#tpu.dimension_semantics<parallel>, #tpu.dimension_semantics<parallel>, #tpu.dimension_semantics<arbitrary>], iteration_bounds = array<i64: 1, 1, 1>, scalar_prefetch = 0 : i64, scratch_operands = 1 : i64, tpu.core_type = #tpu.core_type<tc>, window_params = [{transform_indices = @transform_0, window_bounds = array<i64: 2, 384>}, {transform_indices = @transform_1, window_bounds = array<i64: 384, 256>}, {transform_indices = @transform_2, window_bounds = array<i64: 1, 256>}, {transform_indices = @transform_3, window_bounds = array<i64: 2, 256>}]} {
    %c0_i32 = arith.constant 0 : i32
    %0 = arith.cmpi eq, %arg2, %c0_i32 : i32
    %1 = arith.extui %0 : i1 to i32
    %c0_i32_0 = arith.constant 0 : i32
    %2 = arith.cmpi ne, %1, %c0_i32_0 : i32
    scf.if %2 {
      %cst_10 = arith.constant 0.000000e+00 : f32
      %12 = vector.broadcast %cst_10 : f32 to vector<2x256xf32>
      %c0_11 = arith.constant 0 : index
      %c0_12 = arith.constant 0 : index
      %13 = vector.load %arg7[%c0_11, %c0_12] : memref<2x256xf32, #tpu.memory_space<vmem>>, vector<2x256xf32>
      tpu.vector_store %arg7[%c0_11, %c0_12], %12 {strides = array<i32>} : memref<2x256xf32, #tpu.memory_space<vmem>>, vector<2x256xf32>,
    } else {
    }
    %c0 = arith.constant 0 : index
    %c0_1 = arith.constant 0 : index
    %3 = vector.load %arg7[%c0, %c0_1] : memref<2x256xf32, #tpu.memory_space<vmem>>, vector<2x256xf32>
    %c0_2 = arith.constant 0 : index
    %c0_3 = arith.constant 0 : index
    %4 = vector.load %arg3[%c0_2, %c0_3] : memref<2x384xbf16, #tpu.memory_space<vmem>>, vector<2x384xbf16>
    %c0_4 = arith.constant 0 : index
    %c0_5 = arith.constant 0 : index
    %5 = vector.load %arg4[%c0_4, %c0_5] : memref<384x256xbf16, #tpu.memory_space<vmem>>, vector<384x256xbf16>
    %cst = arith.constant dense<0.000000e+00> : vector<2x256xf32>
    %6 = tpu.matmul %4, %5, %cst {dimension_numbers = #tpu.dot_dimension_numbers<[1], [0], [0], [1], [0, 0, 1, 1], [], []>} : vector<2x384xbf16>, vector<384x256xbf16>, vector<2x256xf32> -> vector<2x256xf32>
    %7 = arith.addf %3, %6 : vector<2x256xf32>
    %c0_6 = arith.constant 0 : index
    %c0_7 = arith.constant 0 : index
    %8 = vector.load %arg7[%c0_6, %c0_7] : memref<2x256xf32, #tpu.memory_space<vmem>>, vector<2x256xf32>
    tpu.vector_store %arg7[%c0_6, %c0_7], %7 {strides = array<i32>} : memref<2x256xf32, #tpu.memory_space<vmem>>, vector<2x256xf32>,
    %c0_i32_8 = arith.constant 0 : i32
    %9 = arith.cmpi eq, %arg2, %c0_i32_8 : i32
    %10 = arith.extui %9 : i1 to i32
    %c0_i32_9 = arith.constant 0 : i32
    %11 = arith.cmpi ne, %10, %c0_i32_9 : i32
    scf.if %11 {
      %c0_10 = arith.constant 0 : index
      %c0_11 = arith.constant 0 : index
      %12 = vector.load %arg7[%c0_10, %c0_11] : memref<2x256xf32, #tpu.memory_space<vmem>>, vector<2x256xf32>
      %c0_12 = arith.constant 0 : index
      %c0_13 = arith.constant 0 : index
      %13 = vector.load %arg5[%c0_12, %c0_13] : memref<1x256xf32, #tpu.memory_space<vmem>>, vector<1x256xf32>
      %14 = vector.broadcast %13 : vector<1x256xf32> to vector<2x256xf32>
      %15 = arith.addf %12, %14 : vector<2x256xf32>
      %cst_14 = arith.constant 0.000000e+00 : f32
      %16 = vector.broadcast %cst_14 : f32 to vector<2x256xf32>
      %17 = arith.cmpf ogt, %15, %16 : vector<2x256xf32>
      %cst_15 = arith.constant 0.000000e+00 : f32
      %18 = vector.broadcast %cst_15 : f32 to vector<2x256xf32>
      %19 = arith.minimumf %15, %18 : vector<2x256xf32>
      %20 = math.exp %19 : vector<2x256xf32>
      %cst_16 = arith.constant 1.000000e+00 : f32
      %21 = vector.broadcast %cst_16 : f32 to vector<2x256xf32>
      %22 = arith.subf %20, %21 : vector<2x256xf32>
      %23 = arith.select %17, %15, %22 : vector<2x256xi1>, vector<2x256xf32>
      %24 = arith.truncf %23 : vector<2x256xf32> to vector<2x256xbf16>
      %c0_17 = arith.constant 0 : index
      %c0_18 = arith.constant 0 : index
      %25 = vector.load %arg6[%c0_17, %c0_18] : memref<2x256xbf16, #tpu.memory_space<vmem>>, vector<2x256xbf16>
      tpu.vector_store %arg6[%c0_17, %c0_18], %24 {strides = array<i32>} : memref<2x256xbf16, #tpu.memory_space<vmem>>, vector<2x256xbf16>,
    } else {
    }
    return
  }
  func.func @transform_0(%arg0: i32, %arg1: i32, %arg2: i32) -> (i32, i32) {
    %c0_i32 = arith.constant 0 : i32
    return %arg0, %arg2 : i32, i32
  }
  func.func @transform_1(%arg0: i32, %arg1: i32, %arg2: i32) -> (i32, i32) {
    %c0_i32 = arith.constant 0 : i32
    return %arg2, %arg1 : i32, i32
  }
  func.func @transform_2(%arg0: i32, %arg1: i32, %arg2: i32) -> (i32, i32) {
    %c0_i32 = arith.constant 0 : i32
    %c0_i32_0 = arith.constant 0 : i32
    return %c0_i32, %arg1 : i32, i32
  }
  func.func @transform_3(%arg0: i32, %arg1: i32, %arg2: i32) -> (i32, i32) {
    %c0_i32 = arith.constant 0 : i32
    return %arg0, %arg1 : i32, i32
  }
}

module attributes {stable_mosaic.version = 11 : i64} {
  func.func @_head_kernel(%arg0: i32, %arg1: i32, %arg2: memref<2x256xbf16, #tpu.memory_space<vmem>>, %arg3: memref<256x32xbf16, #tpu.memory_space<vmem>>, %arg4: memref<1x32xf32, #tpu.memory_space<vmem>>, %arg5: memref<1x32xf32, #tpu.memory_space<vmem>>, %arg6: memref<1x1xf32, #tpu.memory_space<smem>>, %arg7: memref<2x1xf32, #tpu.memory_space<vmem>>, %arg8: memref<2x32xf32, #tpu.memory_space<vmem>>) attributes {dimension_semantics = [#tpu.dimension_semantics<parallel>, #tpu.dimension_semantics<arbitrary>], iteration_bounds = array<i64: 1, 1>, scalar_prefetch = 0 : i64, scratch_operands = 1 : i64, tpu.core_type = #tpu.core_type<tc>, window_params = [{transform_indices = @transform_0, window_bounds = array<i64: 2, 256>}, {transform_indices = @transform_1, window_bounds = array<i64: 256, 32>}, {pipeline_mode = #tpu.pipeline_mode<synchronous>, transform_indices = @transform_2, window_bounds = array<i64: 1, 32>}, {pipeline_mode = #tpu.pipeline_mode<synchronous>, transform_indices = @transform_3, window_bounds = array<i64: 1, 32>}, {transform_indices = @transform_4, window_bounds = array<i64: 1, 1>}, {transform_indices = @transform_5, window_bounds = array<i64: 2, 1>}]} {
    %c0_i32 = arith.constant 0 : i32
    %0 = arith.cmpi eq, %arg1, %c0_i32 : i32
    %1 = arith.extui %0 : i1 to i32
    %c0_i32_0 = arith.constant 0 : i32
    %2 = arith.cmpi ne, %1, %c0_i32_0 : i32
    scf.if %2 {
      %cst_10 = arith.constant 0.000000e+00 : f32
      %12 = vector.broadcast %cst_10 : f32 to vector<2x32xf32>
      %c0_11 = arith.constant 0 : index
      %c0_12 = arith.constant 0 : index
      %13 = vector.load %arg8[%c0_11, %c0_12] : memref<2x32xf32, #tpu.memory_space<vmem>>, vector<2x32xf32>
      tpu.vector_store %arg8[%c0_11, %c0_12], %12 {strides = array<i32>} : memref<2x32xf32, #tpu.memory_space<vmem>>, vector<2x32xf32>,
    } else {
    }
    %c0 = arith.constant 0 : index
    %c0_1 = arith.constant 0 : index
    %3 = vector.load %arg8[%c0, %c0_1] : memref<2x32xf32, #tpu.memory_space<vmem>>, vector<2x32xf32>
    %c0_2 = arith.constant 0 : index
    %c0_3 = arith.constant 0 : index
    %4 = vector.load %arg2[%c0_2, %c0_3] : memref<2x256xbf16, #tpu.memory_space<vmem>>, vector<2x256xbf16>
    %c0_4 = arith.constant 0 : index
    %c0_5 = arith.constant 0 : index
    %5 = vector.load %arg3[%c0_4, %c0_5] : memref<256x32xbf16, #tpu.memory_space<vmem>>, vector<256x32xbf16>
    %cst = arith.constant dense<0.000000e+00> : vector<2x32xf32>
    %6 = tpu.matmul %4, %5, %cst {dimension_numbers = #tpu.dot_dimension_numbers<[1], [0], [0], [1], [0, 0, 1, 1], [], []>} : vector<2x256xbf16>, vector<256x32xbf16>, vector<2x32xf32> -> vector<2x32xf32>
    %7 = arith.addf %3, %6 : vector<2x32xf32>
    %c0_6 = arith.constant 0 : index
    %c0_7 = arith.constant 0 : index
    %8 = vector.load %arg8[%c0_6, %c0_7] : memref<2x32xf32, #tpu.memory_space<vmem>>, vector<2x32xf32>
    tpu.vector_store %arg8[%c0_6, %c0_7], %7 {strides = array<i32>} : memref<2x32xf32, #tpu.memory_space<vmem>>, vector<2x32xf32>,
    %c0_i32_8 = arith.constant 0 : i32
    %9 = arith.cmpi eq, %arg1, %c0_i32_8 : i32
    %10 = arith.extui %9 : i1 to i32
    %c0_i32_9 = arith.constant 0 : i32
    %11 = arith.cmpi ne, %10, %c0_i32_9 : i32
    scf.if %11 {
      %c0_10 = arith.constant 0 : index
      %c0_11 = arith.constant 0 : index
      %12 = vector.load %arg8[%c0_10, %c0_11] : memref<2x32xf32, #tpu.memory_space<vmem>>, vector<2x32xf32>
      %c0_12 = arith.constant 0 : index
      %c0_13 = arith.constant 0 : index
      %13 = vector.load %arg4[%c0_12, %c0_13] : memref<1x32xf32, #tpu.memory_space<vmem>>, vector<1x32xf32>
      %14 = vector.broadcast %13 : vector<1x32xf32> to vector<2x32xf32>
      %15 = arith.addf %12, %14 : vector<2x32xf32>
      %cst_14 = arith.constant 0.000000e+00 : f32
      %16 = vector.broadcast %cst_14 : f32 to vector<2x32xf32>
      %17 = arith.cmpf ogt, %15, %16 : vector<2x32xf32>
      %cst_15 = arith.constant 0.000000e+00 : f32
      %18 = vector.broadcast %cst_15 : f32 to vector<2x32xf32>
      %19 = arith.minimumf %15, %18 : vector<2x32xf32>
      %20 = math.exp %19 : vector<2x32xf32>
      %cst_16 = arith.constant 1.000000e+00 : f32
      %21 = vector.broadcast %cst_16 : f32 to vector<2x32xf32>
      %22 = arith.subf %20, %21 : vector<2x32xf32>
      %23 = arith.select %17, %15, %22 : vector<2x32xi1>, vector<2x32xf32>
      %c0_17 = arith.constant 0 : index
      %c0_18 = arith.constant 0 : index
      %24 = vector.load %arg5[%c0_17, %c0_18] : memref<1x32xf32, #tpu.memory_space<vmem>>, vector<1x32xf32>
      %25 = vector.broadcast %24 : vector<1x32xf32> to vector<2x32xf32>
      %26 = arith.mulf %23, %25 : vector<2x32xf32>
      %cst_19 = arith.constant dense<0.000000e+00> : vector<2xf32>
      %27 = vector.multi_reduction <add>, %26, %cst_19 [1] : vector<2x32xf32> to vector<2xf32>
      %28 = vector.shape_cast %27 : vector<2xf32> to vector<2x1xf32>
      %c0_20 = arith.constant 0 : index
      %c0_21 = arith.constant 0 : index
      %29 = memref.load %arg6[%c0_20, %c0_21] : memref<1x1xf32, #tpu.memory_space<smem>>
      %30 = vector.broadcast %29 : f32 to vector<2x1xf32>
      %31 = arith.addf %28, %30 : vector<2x1xf32>
      %c0_22 = arith.constant 0 : index
      %c0_23 = arith.constant 0 : index
      %32 = vector.load %arg7[%c0_22, %c0_23] : memref<2x1xf32, #tpu.memory_space<vmem>>, vector<2x1xf32>
      tpu.vector_store %arg7[%c0_22, %c0_23], %31 {strides = array<i32>} : memref<2x1xf32, #tpu.memory_space<vmem>>, vector<2x1xf32>,
    } else {
    }
    return
  }
  func.func @transform_0(%arg0: i32, %arg1: i32) -> (i32, i32) {
    %c0_i32 = arith.constant 0 : i32
    return %arg0, %arg1 : i32, i32
  }
  func.func @transform_1(%arg0: i32, %arg1: i32) -> (i32, i32) {
    %c0_i32 = arith.constant 0 : i32
    %c0_i32_0 = arith.constant 0 : i32
    return %arg1, %c0_i32 : i32, i32
  }
  func.func @transform_2(%arg0: i32, %arg1: i32) -> (i32, i32) {
    %c0_i32 = arith.constant 0 : i32
    %c0_i32_0 = arith.constant 0 : i32
    %c0_i32_1 = arith.constant 0 : i32
    return %c0_i32, %c0_i32_0 : i32, i32
  }
  func.func @transform_3(%arg0: i32, %arg1: i32) -> (i32, i32) {
    %c0_i32 = arith.constant 0 : i32
    %c0_i32_0 = arith.constant 0 : i32
    %c0_i32_1 = arith.constant 0 : i32
    return %c0_i32, %c0_i32_0 : i32, i32
  }
  func.func @transform_4(%arg0: i32, %arg1: i32) -> (i32, i32) {
    %c0_i32 = arith.constant 0 : i32
    %c0_i32_0 = arith.constant 0 : i32
    %c0_i32_1 = arith.constant 0 : i32
    return %c0_i32, %c0_i32_0 : i32, i32
  }
  func.func @transform_5(%arg0: i32, %arg1: i32) -> (i32, i32) {
    %c0_i32 = arith.constant 0 : i32
    %c0_i32_0 = arith.constant 0 : i32
    return %arg0, %c0_i32 : i32, i32
  }
}

</mosaic_0001>

<llo_original>
// kernel: model_forward.4
$region0: #{model_forward.4}
  #allocation0 [shape = 'u32[]', space=smem, size = 0x4, offset = 0x4, fixed_abs, tag = 'smem constant byte address 0x4 - core index']
  #allocation1 [shape = 'u32[144,128]{1,0:T(1,128)}', space=vmem, size = 0x12000, scoped, tag = 'internal scratch']
  #allocation2 [shape = 'f32[48,32]{1,0:T(8,128)}', space=vmem, size = 0x6000, scoped, tag = 'scratch operand']
  %s0 = inlined_call_operand.hbm [shape: bf16[48,16], index: 0, kind: input, shape index: {}]
  %s1 = inlined_call_operand.hbm [shape: bf16[16,32], index: 1, kind: input, shape index: {}]
  %s2 = inlined_call_operand.hbm [shape: f32[1,32], index: 2, kind: input, shape index: {}]
  %s3 = inlined_call_operand.hbm [shape: bf16[48,32], index: 3, kind: output, shape index: {}]
  %s4 = sld [smem:[#allocation0]]
  $region42: #{model_forward.4} parent=0
    _
  %s6 = ssub.s32 1, %s4
  %s7 = scalar_select 0, %s6, %s4
  $region1: #{model_forward.4} parent=0
    #allocation3 [shape = 'u8[12288]{0}', space=vmem, size = 0x3000, scoped, tag = 'input window, operand 0, single buffered']
    #allocation4 [shape = 's32[1]{0}', space=sflag, size = 0x4, scoped, tag = 'scoped memory for model_forward.4']
    #allocation5 [shape = 's32[1]{0}', space=sflag, size = 0x4, scoped, tag = 'scoped memory for model_forward.4']
    #allocation6 [shape = 'u8[4096]{0}', space=vmem, size = 0x1000, scoped, tag = 'input window, operand 1, single buffered']
    #allocation7 [shape = 's32[1]{0}', space=sflag, size = 0x4, scoped, tag = 'scoped memory for model_forward.4']
    #allocation8 [shape = 'u8[512]{0}', space=vmem, size = 0x400, scoped, tag = 'input window, operand 2, single buffered']
    #allocation9 [shape = 'u8[12288]{0}', space=vmem, size = 0x3000, scoped, tag = 'output window, operand 0, single buffered']
    %8 = vsyncpa [#allocation4], 0
    %9 = vsyncpa [#allocation7], 0
    %10 = vsyncpa [#allocation5], 0
    // Predicated region
    $region2: #{model_forward.4} parent=1 // pred_check
      _
    $region3: #{model_forward.4} parent=1 // pred_check_branch
      %12 = sbr.rel (0) target = $region5
    $region4: #{model_forward.4} parent=1 // pred_region
      %s14 = ssub.s32 384, 384
      %15 = vsyncadd [#allocation4], %s14
      %s16 = sshll.u32 [#allocation3], 4
      %s17 = int_to_ptr.vmem [resolvable:$true] %s16
      %22 = dma.hbm_to_vmem [thread:$0]  %s0, 384, %s17, [#allocation4], 64, 64, 4
    $region5: #{model_forward.4} parent=1 // pred_fallthru
      _
    // Predicated region
    $region6: #{model_forward.4} parent=1 // pred_check
      _
    $region7: #{model_forward.4} parent=1 // pred_check_branch
      %24 = sbr.rel (0) target = $region9
    $region8: #{model_forward.4} parent=1 // pred_region
      %s26 = ssub.s32 128, 128
      %27 = vsyncadd [#allocation7], %s26
      %s28 = sshll.u32 [#allocation6], 4
      %s29 = int_to_ptr.vmem [resolvable:$true] %s28
      %34 = dma.hbm_to_vmem [thread:$0]  %s1, 128, %s29, [#allocation7], 64, 64, 4
    $region9: #{model_forward.4} parent=1 // pred_fallthru
      _
    // Predicated region
    $region10: #{model_forward.4} parent=1 // pred_check
      _
    $region11: #{model_forward.4} parent=1 // pred_check_branch
      %36 = sbr.rel (0) target = $region13
    $region12: #{model_forward.4} parent=1 // pred_region
      %s38 = ssub.s32 16, 16
      %39 = vsyncadd [#allocation7], %s38
      %s41 = sshll.u32 [#allocation8], 4
      %s42 = int_to_ptr.vmem [resolvable:$true] %s41
      %44 = dma.hbm_to_vmem [thread:$0]  %s2, 16, %s42, [#allocation7]
    $region13: #{model_forward.4} parent=1 // pred_fallthru
      _
    // Predicated region
    $region14: #{model_forward.4} parent=1 // pred_check
      _
    $region15: #{model_forward.4} parent=1 // pred_check_branch
      %46 = sbr.rel (0) target = $region17
    $region16: #{model_forward.4} parent=1 // pred_region
      %47 = dma.done [#allocation4], 384
    $region17: #{model_forward.4} parent=1 // pred_fallthru
      _
    // Predicated region
    $region18: #{model_forward.4} parent=1 // pred_check
      _
    $region19: #{model_forward.4} parent=1 // pred_check_branch
      %49 = sbr.rel (0) target = $region21
    $region20: #{model_forward.4} parent=1 // pred_region
      %50 = dma.done [#allocation7], 128
    $region21: #{model_forward.4} parent=1 // pred_fallthru
      _
    // Predicated region
    $region22: #{model_forward.4} parent=1 // pred_check
      _
    $region23: #{model_forward.4} parent=1 // pred_check_branch
      %52 = sbr.rel (0) target = $region25
    $region24: #{model_forward.4} parent=1 // pred_region
      %53 = dma.done [#allocation7], 16
    $region25: #{model_forward.4} parent=1 // pred_fallthru
      _
    %p55 = scmp.eq.s32.totalorder 0, 0
    // Predicated region
    $region26: #{model_forward.4} parent=1 // pred_check
      %p56 = pneg %p55
    $region27: #{model_forward.4} parent=1 // pred_check_branch
      %58 = sbr.rel (%p56) target = $region29
    $region28: #{model_forward.4} parent=1 // pred_region
      %vm59 = vcmask 261120
      %60 = vst.msk [vmem:[#allocation2] sm:$0xff] %vm59, 0.0
      %61 = vst.msk [vmem:[#allocation2 + $0x8] sm:$0xff] %vm59, 0.0
      %62 = vst.msk [vmem:[#allocation2 + $0x10] sm:$0xff] %vm59, 0.0
      %63 = vst.msk [vmem:[#allocation2 + $0x18] sm:$0xff] %vm59, 0.0
      %64 = vst.msk [vmem:[#allocation2 + $0x20] sm:$0xff] %vm59, 0.0
      %65 = vst.msk [vmem:[#allocation2 + $0x28] sm:$0xff] %vm59, 0.0
    $region29: #{model_forward.4} parent=1 // pred_fallthru
      _
    %v66 = vld [vmem:[#allocation2] sm:$0xff]
    %v67 = vld [vmem:[#allocation2 + $0x8] sm:$0xff]
    %v68 = vld [vmem:[#allocation2 + $0x10] sm:$0xff]
    %v69 = vld [vmem:[#allocation2 + $0x18] sm:$0xff]
    %v70 = vld [vmem:[#allocation2 + $0x20] sm:$0xff]
    %v71 = vld [vmem:[#allocation2 + $0x28] sm:$0xff]
    %v72 = vld [vmem:[#allocation3] sm:$0xf]
    %v73 = vld [vmem:[#allocation3 + $0x4] sm:$0xf]
    %v74 = vld [vmem:[#allocation3 + $0x8] sm:$0xf]
    %v75 = vld [vmem:[#allocation3 + $0xc] sm:$0xf]
    %v76 = vld [vmem:[#allocation3 + $0x10] sm:$0xf]
    %v77 = vld [vmem:[#allocation3 + $0x14] sm:$0xf]
    %v78 = vld [vmem:[#allocation6] sm:$0xf]
    %v79 = vld [vmem:[#allocation6 + $0x4] sm:$0xf]
    %v86 = vunpack.c.l.b16 %v72
    %v87 = vunpack.c.l.b16 %v73
    %v88 = vunpack.c.l.b16 %v74
    %v89 = vunpack.c.l.b16 %v75
    %v90 = vunpack.c.l.b16 %v76
    %v91 = vunpack.c.l.b16 %v77
    %v92 = vpack.c.b16 %v87, %v86
    %v93 = vpack.c.b16 %v89, %v88
    %v94 = vpack.c.b16 %v91, %v90
    %v97 = vunpack.c.l.b16 %v78
    %v98 = vunpack.c.l.b16 %v79
    %v99 = vpack.c.b16 %v98, %v97
    %vm101 = vcmask 130048
    %v103 = vsel %vm101, %v92, 0
    %v106 = vsel %vm101, %v93, 0
    %v109 = vsel %vm101, %v94, 0
    %111 = vmatprep.subr.bf16.mxu0 0
    %112 = vmatpush1.bf16.msra.mxu0 %v99
    %113 = vmatprep.subr.bf16.mxu0 0
    %114 = vmatpush1.bf16.msra.mxu0 0
    %115 = vmatprep.subr.bf16.mxu0 0
    %116 = vmatpush1.bf16.msra.mxu0 0
    %117 = vmatprep.subr.bf16.mxu0 0
    %118 = vmatpush1.bf16.msra.mxu0 0
    %119 = vmatprep.subr.bf16.mxu0 0
    %120 = vmatpush1.bf16.msra.mxu0 0
    %121 = vmatprep.subr.bf16.mxu0 0
    %122 = vmatpush1.bf16.msra.mxu0 0
    %123 = vmatprep.subr.bf16.mxu0 0
    %124 = vmatpush1.bf16.msra.mxu0 0
    %125 = vmatprep.subr.bf16.mxu0 0
    %126 = vmatpush1.bf16.msra.mxu0 0
    %127 = vmatprep.subr.bf16.mxu0 0
    %128 = vmatpush1.bf16.msra.mxu0 0
    %129 = vmatprep.subr.bf16.mxu0 0
    %130 = vmatpush1.bf16.msra.mxu0 0
    %131 = vmatprep.subr.bf16.mxu0 0
    %132 = vmatpush1.bf16.msra.mxu0 0
    %133 = vmatprep.subr.bf16.mxu0 0
    %134 = vmatpush1.bf16.msra.mxu0 0
    %135 = vmatprep.subr.bf16.mxu0 0
    %136 = vmatpush1.bf16.msra.mxu0 0
    %137 = vmatprep.subr.bf16.mxu0 0
    %138 = vmatpush1.bf16.msra.mxu0 0
    %139 = vmatprep.subr.bf16.mxu0 0
    %140 = vmatpush1.bf16.msra.mxu0 0
    %141 = vmatprep.subr.bf16.mxu0 0
    %142 = vmatpush1.bf16.msra.mxu0 0
    %143 = vmatprep.mubr.bf16.mxu0 0
    %144 = vmatmul.mubr.bf16.gmra.mrb[0].mxu0 %v103
    %v145 = vpop.f32.mrb[0].mxu0
    %v146 = vadd.f32 0.0, %v145
    %v147 = vpop.f32.mrb[0].mxu0
    %v148 = vpop.f32.mrb[0].mxu0
    %v149 = vadd.f32 0.0, %v148
    %v150 = vpop.f32.mrb[0].mxu0
    %151 = vmatprep.mubr.bf16.mxu0 0
    %152 = vmatmul.mubr.bf16.gmra.mrb[0].mxu0 %v106
    %v153 = vpop.f32.mrb[0].mxu0
    %v154 = vadd.f32 0.0, %v153
    %v155 = vpop.f32.mrb[0].mxu0
    %v156 = vpop.f32.mrb[0].mxu0
    %v157 = vadd.f32 0.0, %v156
    %v158 = vpop.f32.mrb[0].mxu0
    %159 = vmatprep.mubr.bf16.mxu0 0
    %160 = vmatmul.mubr.bf16.gmra.mrb[0].mxu0 %v109
    %v161 = vpop.f32.mrb[0].mxu0
    %v162 = vadd.f32 0.0, %v161
    %v163 = vpop.f32.mrb[0].mxu0
    %v164 = vpop.f32.mrb[0].mxu0
    %v165 = vadd.f32 0.0, %v164
    %v166 = vpop.f32.mrb[0].mxu0
    %167 = vdwg.mxu0
    %v168 = vadd.f32 %v66, %v146
    %v169 = vadd.f32 %v67, %v149
    %v170 = vadd.f32 %v68, %v154
    %v171 = vadd.f32 %v69, %v157
    %v172 = vadd.f32 %v70, %v162
    %v173 = vadd.f32 %v71, %v165
    %vm174 = vcmask 261120
    %175 = vst.msk [vmem:[#allocation2] sm:$0xff] %vm174, %v168
    %176 = vst.msk [vmem:[#allocation2 + $0x8] sm:$0xff] %vm174, %v169
    %177 = vst.msk [vmem:[#allocation2 + $0x10] sm:$0xff] %vm174, %v170
    %178 = vst.msk [vmem:[#allocation2 + $0x18] sm:$0xff] %vm174, %v171
    %179 = vst.msk [vmem:[#allocation2 + $0x20] sm:$0xff] %vm174, %v172
    %180 = vst.msk [vmem:[#allocation2 + $0x28] sm:$0xff] %vm174, %v173
    // Predicated region
    $region30: #{model_forward.4} parent=1 // pred_check
      %p181 = pneg %p55
    $region31: #{model_forward.4} parent=1 // pred_check_branch
      %183 = sbr.rel (%p181) target = $region33
    $region32: #{model_forward.4} parent=1 // pred_region
      %v184 = vld [vmem:[#allocation2] sm:$0xff]
      %v185 = vld [vmem:[#allocation2 + $0x8] sm:$0xff]
      %v186 = vld [vmem:[#allocation2 + $0x10] sm:$0xff]
      %v187 = vld [vmem:[#allocation2 + $0x18] sm:$0xff]
      %v188 = vld [vmem:[#allocation2 + $0x20] sm:$0xff]
      %v189 = vld [vmem:[#allocation2 + $0x28] sm:$0xff]
      %v190 = vld [vmem:[#allocation8] sm:$0x1]
      %v192 = vlaneseq
      %v193 = vshrl.u32 %v192, 7
      %v194 = vsub.s32 0, %v193
      %v195 = vrot.slane %v190, %v194
      %v197 = vadd.f32 %v184, %v195
      %v198 = vadd.f32 %v185, %v195
      %v199 = vadd.f32 %v186, %v195
      %v200 = vadd.f32 %v187, %v195
      %v201 = vadd.f32 %v188, %v195
      %v202 = vadd.f32 %v189, %v195
      %v203 = vpack.c.bf16 %v198, %v197
      %v204 = vpack.c.bf16 %v200, %v199
      %v205 = vpack.c.bf16 %v202, %v201
      %v209 = vunpack.c.l.b16 %v203
      %v210 = vunpack.c.h.b16 %v203
      %v211 = vunpack.c.l.b16 %v204
      %v212 = vunpack.c.h.b16 %v204
      %v213 = vunpack.c.l.b16 %v205
      %v214 = vunpack.c.h.b16 %v205
      %v215 = vpack.c.b16 %v209, %v209
      %v216 = vpack.c.b16 %v210, %v210
      %v217 = vpack.c.b16 %v211, %v211
      %v218 = vpack.c.b16 %v212, %v212
      %v219 = vpack.c.b16 %v213, %v213
      %v220 = vpack.c.b16 %v214, %v214
      %vm227 = vcmask 257024
      %228 = vst.msk [vmem:[#allocation9] sm:$0xf] %vm227, %v215
      %229 = vst.msk [vmem:[#allocation9 + $0x4] sm:$0xf] %vm227, %v216
      %230 = vst.msk [vmem:[#allocation9 + $0x8] sm:$0xf] %vm227, %v217
      %231 = vst.msk [vmem:[#allocation9 + $0xc] sm:$0xf] %vm227, %v218
      %232 = vst.msk [vmem:[#allocation9 + $0x10] sm:$0xf] %vm227, %v219
      %233 = vst.msk [vmem:[#allocation9 + $0x14] sm:$0xf] %vm227, %v220
    $region33: #{model_forward.4} parent=1 // pred_fallthru
      _
    // Predicated region
    $region34: #{model_forward.4} parent=1 // pred_check
      _
    $region35: #{model_forward.4} parent=1 // pred_check_branch
      %235 = sbr.rel (0) target = $region37
    $region36: #{model_forward.4} parent=1 // pred_region
      %s237 = ssub.s32 384, 384
      %238 = vsyncadd [#allocation5], %s237
      %s239 = sshll.u32 [#allocation9], 4
      %s240 = int_to_ptr.vmem [resolvable:$true] %s239
      %245 = dma.vmem_to_hbm [thread:$0]  %s240, 384, %s3, [#allocation5], 64, 64, 4
    $region37: #{model_forward.4} parent=1 // pred_fallthru
      _
    // Predicated region
    $region38: #{model_forward.4} parent=1 // pred_check
      _
    $region39: #{model_forward.4} parent=1 // pred_check_branch
      %247 = sbr.rel (0) target = $region41
    $region40: #{model_forward.4} parent=1 // pred_region
      %248 = dma.done [#allocation5], 384
    $region41: #{model_forward.4} parent=1 // pred_fallthru
      _
    %249 = vsyncpa [#allocation4], 1
    %250 = vsyncpa [#allocation7], 1
    %251 = vsyncpa [#allocation5], 1

// kernel: model_forward.6
$region0: #{model_forward.6}
  #allocation0 [shape = 'u32[]', space=smem, size = 0x4, offset = 0x4, fixed_abs, tag = 'smem constant byte address 0x4 - core index']
  #allocation1 [shape = 'u32[144,128]{1,0:T(1,128)}', space=vmem, size = 0x12000, scoped, tag = 'internal scratch']
  #allocation2 [shape = 'f32[2,256]{1,0:T(2,128)}', space=vmem, size = 0x800, scoped, tag = 'scratch operand']
  %s0 = inlined_call_operand.hbm [shape: bf16[2,384], index: 0, kind: input, shape index: {}]
  %s1 = inlined_call_operand.hbm [shape: bf16[384,256], index: 1, kind: input, shape index: {}]
  %s2 = inlined_call_operand.hbm [shape: f32[1,256], index: 2, kind: input, shape index: {}]
  %s3 = inlined_call_operand.hbm [shape: bf16[2,256], index: 3, kind: output, shape index: {}]
  %s4 = sld [smem:[#allocation0]]
  $region42: #{model_forward.6} parent=0
    _
  %s6 = ssub.s32 1, %s4
  %s7 = scalar_select 0, %s6, %s4
  $region1: #{model_forward.6} parent=0
    #allocation3 [shape = 'u8[1536]{0}', space=vmem, size = 0x800, scoped, tag = 'input window, operand 0, single buffered']
    #allocation4 [shape = 's32[1]{0}', space=sflag, size = 0x4, scoped, tag = 'scoped memory for model_forward.6']
    #allocation5 [shape = 's32[1]{0}', space=sflag, size = 0x4, scoped, tag = 'scoped memory for model_forward.6']
    #allocation6 [shape = 'u8[196608]{0}', space=vmem, size = 0x30000, scoped, tag = 'input window, operand 1, single buffered']
    #allocation7 [shape = 's32[1]{0}', space=sflag, size = 0x4, scoped, tag = 'scoped memory for model_forward.6']
    #allocation8 [shape = 'u8[1024]{0}', space=vmem, size = 0x400, scoped, tag = 'input window, operand 2, single buffered']
    #allocation9 [shape = 'u8[1024]{0}', space=vmem, size = 0x400, scoped, tag = 'output window, operand 0, single buffered']
    %8 = vsyncpa [#allocation4], 0
    %9 = vsyncpa [#allocation7], 0
    %10 = vsyncpa [#allocation5], 0
    // Predicated region
    $region2: #{model_forward.6} parent=1 // pred_check
      _
    $region3: #{model_forward.6} parent=1 // pred_check_branch
      %12 = sbr.rel (0) target = $region5
    $region4: #{model_forward.6} parent=1 // pred_region
      %s14 = ssub.s32 48, 48
      %15 = vsyncadd [#allocation4], %s14
      %s17 = sshll.u32 [#allocation3], 4
      %s18 = int_to_ptr.vmem [resolvable:$true] %s17
      %20 = dma.hbm_to_vmem [thread:$0]  %s0, 48, %s18, [#allocation4]
    $region5: #{model_forward.6} parent=1 // pred_fallthru
      _
    // Predicated region
    $region6: #{model_forward.6} parent=1 // pred_check
      _
    $region7: #{model_forward.6} parent=1 // pred_check_branch
      %22 = sbr.rel (0) target = $region9
    $region8: #{model_forward.6} parent=1 // pred_region
      %s24 = ssub.s32 6144, 6144
      %25 = vsyncadd [#allocation7], %s24
      %s26 = sshll.u32 [#allocation6], 4
      %s27 = int_to_ptr.vmem [resolvable:$true] %s26
      %32 = dma.hbm_to_vmem [thread:$0]  %s1, 6144, %s27, [#allocation7], 128, 128, 8
    $region9: #{model_forward.6} parent=1 // pred_fallthru
      _
    // Predicated region
    $region10: #{model_forward.6} parent=1 // pred_check
      _
    $region11: #{model_forward.6} parent=1 // pred_check_branch
      %34 = sbr.rel (0) target = $region13
    $region12: #{model_forward.6} parent=1 // pred_region
      %s36 = ssub.s32 32, 32
      %37 = vsyncadd [#allocation7], %s36
      %s39 = sshll.u32 [#allocation8], 4
      %s40 = int_to_ptr.vmem [resolvable:$true] %s39
      %42 = dma.hbm_to_vmem [thread:$0]  %s2, 32, %s40, [#allocation7]
    $region13: #{model_forward.6} parent=1 // pred_fallthru
      _
    // Predicated region
    $region14: #{model_forward.6} parent=1 // pred_check
      _
    $region15: #{model_forward.6} parent=1 // pred_check_branch
      %44 = sbr.rel (0) target = $region17
    $region16: #{model_forward.6} parent=1 // pred_region
      %45 = dma.done [#allocation4], 48
    $region17: #{model_forward.6} parent=1 // pred_fallthru
      _
    // Predicated region
    $region18: #{model_forward.6} parent=1 // pred_check
      _
    $region19: #{model_forward.6} parent=1 // pred_check_branch
      %47 = sbr.rel (0) target = $region21
    $region20: #{model_forward.6} parent=1 // pred_region
      %48 = dma.done [#allocation7], 6144
    $region21: #{model_forward.6} parent=1 // pred_fallthru
      _
    // Predicated region
    $region22: #{model_forward.6} parent=1 // pred_check
      _
    $region23: #{model_forward.6} parent=1 // pred_check_branch
      %50 = sbr.rel (0) target = $region25
    $region24: #{model_forward.6} parent=1 // pred_region
      %51 = dma.done [#allocation7], 32
    $region25: #{model_forward.6} parent=1 // pred_fallthru
      _
    %p53 = scmp.eq.s32.totalorder 0, 0
    // Predicated region
    $region26: #{model_forward.6} parent=1 // pred_check
      %p54 = pneg %p53
    $region27: #{model_forward.6} parent=1 // pred_check_branch
      %56 = sbr.rel (%p54) target = $region29
    $region28: #{model_forward.6} parent=1 // pred_region
      %57 = vst [vmem:[#allocation2] sm:$0xf] 0.0
    $region29: #{model_forward.6} parent=1 // pred_fallthru
      _
    %v58 = vld [vmem:[#allocation2] sm:$0xf]
    %v59 = vld [vmem:[#allocation3] sm:$0x7]
    %v60 = vld [vmem:[#allocation6] sm:$0xff]
    %v61 = vld [vmem:[#allocation6 + $0x8] sm:$0xff]
    %v62 = vld [vmem:[#allocation6 + $0x10] sm:$0xff]
    %v63 = vld [vmem:[#allocation6 + $0x18] sm:$0xff]
    %v64 = vld [vmem:[#allocation6 + $0x20] sm:$0xff]
    %v65 = vld [vmem:[#allocation6 + $0x28] sm:$0xff]
    %v66 = vld [vmem:[#allocation6 + $0x30] sm:$0xff]
    %v67 = vld [vmem:[#allocation6 + $0x38] sm:$0xff]
    %v68 = vld [vmem:[#allocation6 + $0x40] sm:$0xff]
    %v69 = vld [vmem:[#allocation6 + $0x48] sm:$0xff]
    %v70 = vld [vmem:[#allocation6 + $0x50] sm:$0xff]
    %v71 = vld [vmem:[#allocation6 + $0x58] sm:$0xff]
    %v72 = vld [vmem:[#allocation6 + $0x60] sm:$0xff]
    %v73 = vld [vmem:[#allocation6 + $0x68] sm:$0xff]
    %v74 = vld [vmem:[#allocation6 + $0x70] sm:$0xff]
    %v75 = vld [vmem:[#allocation6 + $0x78] sm:$0xff]
    %v76 = vld [vmem:[#allocation6 + $0x80] sm:$0xff]
    %v77 = vld [vmem:[#allocation6 + $0x88] sm:$0xff]
    %v78 = vld [vmem:[#allocation6 + $0x90] sm:$0xff]
    %v79 = vld [vmem:[#allocation6 + $0x98] sm:$0xff]
    %v80 = vld [vmem:[#allocation6 + $0xa0] sm:$0xff]
    %v81 = vld [vmem:[#allocation6 + $0xa8] sm:$0xff]
    %v82 = vld [vmem:[#allocation6 + $0xb0] sm:$0xff]
    %v83 = vld [vmem:[#allocation6 + $0xb8] sm:$0xff]
    %v84 = vld [vmem:[#allocation6 + $0xc0] sm:$0xff]
    %v85 = vld [vmem:[#allocation6 + $0xc8] sm:$0xff]
    %v86 = vld [vmem:[#allocation6 + $0xd0] sm:$0xff]
    %v87 = vld [vmem:[#allocation6 + $0xd8] sm:$0xff]
    %v88 = vld [vmem:[#allocation6 + $0xe0] sm:$0xff]
    %v89 = vld [vmem:[#allocation6 + $0xe8] sm:$0xff]
    %v90 = vld [vmem:[#allocation6 + $0xf0] sm:$0xff]
    %v91 = vld [vmem:[#allocation6 + $0xf8] sm:$0xff]
    %v92 = vld [vmem:[#allocation6 + $0x100] sm:$0xff]
    %v93 = vld [vmem:[#allocation6 + $0x108] sm:$0xff]
    %v94 = vld [vmem:[#allocation6 + $0x110] sm:$0xff]
    %v95 = vld [vmem:[#allocation6 + $0x118] sm:$0xff]
    %v96 = vld [vmem:[#allocation6 + $0x120] sm:$0xff]
    %v97 = vld [vmem:[#allocation6 + $0x128] sm:$0xff]
    %v98 = vld [vmem:[#allocation6 + $0x130] sm:$0xff]
    %v99 = vld [vmem:[#allocation6 + $0x138] sm:$0xff]
    %v100 = vld [vmem:[#allocation6 + $0x140] sm:$0xff]
    %v101 = vld [vmem:[#allocation6 + $0x148] sm:$0xff]
    %v102 = vld [vmem:[#allocation6 + $0x150] sm:$0xff]
    %v103 = vld [vmem:[#allocation6 + $0x158] sm:$0xff]
    %v104 = vld [vmem:[#allocation6 + $0x160] sm:$0xff]
    %v105 = vld [vmem:[#allocation6 + $0x168] sm:$0xff]
    %v106 = vld [vmem:[#allocation6 + $0x170] sm:$0xff]
    %v107 = vld [vmem:[#allocation6 + $0x178] sm:$0xff]
    %v110 = vunpack.c.l.s4 1966171168
    %v111 = vunpack.c.0.s8 %v110
    %v112 = vlaneseq
    %v113 = vshrl.u32 %v112, 7
    %v114 = vsub.s32 %v111, %v113
    %v115 = vrot.slane %v59, %v114
    %v116 = vcombine.high %v115, %v115
    %v118 = vunpack.c.l.s4 1966171168
    %v119 = vunpack.c.0.s8 %v118
    %v120 = vlaneseq
    %v121 = vshrl.u32 %v120, 7
    %v122 = vsub.s32 %v119, %v121
    %v123 = vrot.slane %v115, %v122
    %v125 = vunpack.c.l.s4 1966171168
    %v126 = vunpack.c.0.s8 %v125
    %v127 = vlaneseq
    %v128 = vshrl.u32 %v127, 7
    %v129 = vsub.s32 %v126, %v128
    %v130 = vrot.slane %v116, %v129
    %v131 = vcombine.high %v123, %v123
    %v183 = vunpack.c.l.b16 %v60
    %v184 = vunpack.c.h.b16 %v60
    %v185 = vunpack.c.l.b16 %v61
    %v186 = vunpack.c.h.b16 %v61
    %v187 = vunpack.c.l.b16 %v62
    %v188 = vunpack.c.h.b16 %v62
    %v189 = vunpack.c.l.b16 %v63
    %v190 = vunpack.c.h.b16 %v63
    %v191 = vunpack.c.l.b16 %v64
    %v192 = vunpack.c.h.b16 %v64
    %v193 = vunpack.c.l.b16 %v65
    %v194 = vunpack.c.h.b16 %v65
    %v195 = vunpack.c.l.b16 %v66
    %v196 = vunpack.c.h.b16 %v66
    %v197 = vunpack.c.l.b16 %v67
    %v198 = vunpack.c.h.b16 %v67
    %v199 = vunpack.c.l.b16 %v68
    %v200 = vunpack.c.h.b16 %v68
    %v201 = vunpack.c.l.b16 %v69
    %v202 = vunpack.c.h.b16 %v69
    %v203 = vunpack.c.l.b16 %v70
    %v204 = vunpack.c.h.b16 %v70
    %v205 = vunpack.c.l.b16 %v71
    %v206 = vunpack.c.h.b16 %v71
    %v207 = vunpack.c.l.b16 %v72
    %v208 = vunpack.c.h.b16 %v72
    %v209 = vunpack.c.l.b16 %v73
    %v210 = vunpack.c.h.b16 %v73
    %v211 = vunpack.c.l.b16 %v74
    %v212 = vunpack.c.h.b16 %v74
    %v213 = vunpack.c.l.b16 %v75
    %v214 = vunpack.c.h.b16 %v75
    %v215 = vunpack.c.l.b16 %v76
    %v216 = vunpack.c.h.b16 %v76
    %v217 = vunpack.c.l.b16 %v77
    %v218 = vunpack.c.h.b16 %v77
    %v219 = vunpack.c.l.b16 %v78
    %v220 = vunpack.c.h.b16 %v78
    %v221 = vunpack.c.l.b16 %v79
    %v222 = vunpack.c.h.b16 %v79
    %v223 = vunpack.c.l.b16 %v80
    %v224 = vunpack.c.h.b16 %v80
    %v225 = vunpack.c.l.b16 %v81
    %v226 = vunpack.c.h.b16 %v81
    %v227 = vunpack.c.l.b16 %v82
    %v228 = vunpack.c.h.b16 %v82
    %v229 = vunpack.c.l.b16 %v83
    %v230 = vunpack.c.h.b16 %v83
    %v231 = vunpack.c.l.b16 %v84
    %v232 = vunpack.c.h.b16 %v84
    %v233 = vunpack.c.l.b16 %v85
    %v234 = vunpack.c.h.b16 %v85
    %v235 = vunpack.c.l.b16 %v86
    %v236 = vunpack.c.h.b16 %v86
    %v237 = vunpack.c.l.b16 %v87
    %v238 = vunpack.c.h.b16 %v87
    %v239 = vunpack.c.l.b16 %v88
    %v240 = vunpack.c.h.b16 %v88
    %v241 = vunpack.c.l.b16 %v89
    %v242 = vunpack.c.h.b16 %v89
    %v243 = vunpack.c.l.b16 %v90
    %v244 = vunpack.c.h.b16 %v90
    %v245 = vunpack.c.l.b16 %v91
    %v246 = vunpack.c.h.b16 %v91
    %v247 = vunpack.c.l.b16 %v92
    %v248 = vunpack.c.h.b16 %v92
    %v249 = vunpack.c.l.b16 %v93
    %v250 = vunpack.c.h.b16 %v93
    %v251 = vunpack.c.l.b16 %v94
    %v252 = vunpack.c.h.b16 %v94
    %v253 = vunpack.c.l.b16 %v95
    %v254 = vunpack.c.h.b16 %v95
    %v255 = vunpack.c.l.b16 %v96
    %v256 = vunpack.c.h.b16 %v96
    %v257 = vunpack.c.l.b16 %v97
    %v258 = vunpack.c.h.b16 %v97
    %v259 = vunpack.c.l.b16 %v98
    %v260 = vunpack.c.h.b16 %v98
    %v261 = vunpack.c.l.b16 %v99
    %v262 = vunpack.c.h.b16 %v99
    %v263 = vunpack.c.l.b16 %v100
    %v264 = vunpack.c.h.b16 %v100
    %v265 = vunpack.c.l.b16 %v101
    %v266 = vunpack.c.h.b16 %v101
    %v267 = vunpack.c.l.b16 %v102
    %v268 = vunpack.c.h.b16 %v102
    %v269 = vunpack.c.l.b16 %v103
    %v270 = vunpack.c.h.b16 %v103
    %v271 = vunpack.c.l.b16 %v104
    %v272 = vunpack.c.h.b16 %v104
    %v273 = vunpack.c.l.b16 %v105
    %v274 = vunpack.c.h.b16 %v105
    %v275 = vunpack.c.l.b16 %v106
    %v276 = vunpack.c.h.b16 %v106
    %v277 = vunpack.c.l.b16 %v107
    %v278 = vunpack.c.h.b16 %v107
    %v279 = vpack.c.b16 %v185, %v183
    %v280 = vpack.c.b16 %v186, %v184
    %v281 = vpack.c.b16 %v189, %v187
    %v282 = vpack.c.b16 %v190, %v188
    %v283 = vpack.c.b16 %v193, %v191
    %v284 = vpack.c.b16 %v194, %v192
    %v285 = vpack.c.b16 %v197, %v195
    %v286 = vpack.c.b16 %v198, %v196
    %v287 = vpack.c.b16 %v201, %v199
    %v288 = vpack.c.b16 %v202, %v200
    %v289 = vpack.c.b16 %v205, %v203
    %v290 = vpack.c.b16 %v206, %v204
    %v291 = vpack.c.b16 %v209, %v207
    %v292 = vpack.c.b16 %v210, %v208
    %v293 = vpack.c.b16 %v213, %v211
    %v294 = vpack.c.b16 %v214, %v212
    %v295 = vpack.c.b16 %v217, %v215
    %v296 = vpack.c.b16 %v218, %v216
    %v297 = vpack.c.b16 %v221, %v219
    %v298 = vpack.c.b16 %v222, %v220
    %v299 = vpack.c.b16 %v225, %v223
    %v300 = vpack.c.b16 %v226, %v224
    %v301 = vpack.c.b16 %v229, %v227
    %v302 = vpack.c.b16 %v230, %v228
    %v303 = vpack.c.b16 %v233, %v231
    %v304 = vpack.c.b16 %v234, %v232
    %v305 = vpack.c.b16 %v237, %v235
    %v306 = vpack.c.b16 %v238, %v236
    %v307 = vpack.c.b16 %v241, %v239
    %v308 = vpack.c.b16 %v242, %v240
    %v309 = vpack.c.b16 %v245, %v243
    %v310 = vpack.c.b16 %v246, %v244
    %v311 = vpack.c.b16 %v249, %v247
    %v312 = vpack.c.b16 %v250, %v248
    %v313 = vpack.c.b16 %v253, %v251
    %v314 = vpack.c.b16 %v254, %v252
    %v315 = vpack.c.b16 %v257, %v255
    %v316 = vpack.c.b16 %v258, %v256
    %v317 = vpack.c.b16 %v261, %v259
    %v318 = vpack.c.b16 %v262, %v260
    %v319 = vpack.c.b16 %v265, %v263
    %v320 = vpack.c.b16 %v266, %v264
    %v321 = vpack.c.b16 %v269, %v267
    %v322 = vpack.c.b16 %v270, %v268
    %v323 = vpack.c.b16 %v273, %v271
    %v324 = vpack.c.b16 %v274, %v272
    %v325 = vpack.c.b16 %v277, %v275
    %v326 = vpack.c.b16 %v278, %v276
    %375 = vmatprep.subr.bf16.mxu0 %v280
    %376 = vmatpush1.bf16.msra.mxu0 %v279
    %377 = vmatprep.subr.bf16.mxu0 %v282
    %378 = vmatpush1.bf16.msra.mxu0 %v281
    %379 = vmatprep.subr.bf16.mxu0 %v284
    %380 = vmatpush1.bf16.msra.mxu0 %v283
    %381 = vmatprep.subr.bf16.mxu0 %v286
    %382 = vmatpush1.bf16.msra.mxu0 %v285
    %383 = vmatprep.subr.bf16.mxu0 %v288
    %384 = vmatpush1.bf16.msra.mxu0 %v287
    %385 = vmatprep.subr.bf16.mxu0 %v290
    %386 = vmatpush1.bf16.msra.mxu0 %v289
    %387 = vmatprep.subr.bf16.mxu0 %v292
    %388 = vmatpush1.bf16.msra.mxu0 %v291
    %389 = vmatprep.subr.bf16.mxu0 %v294
    %390 = vmatpush1.bf16.msra.mxu0 %v293
    %391 = vmatprep.subr.bf16.mxu0 %v296
    %392 = vmatpush1.bf16.msra.mxu0 %v295
    %393 = vmatprep.subr.bf16.mxu0 %v298
    %394 = vmatpush1.bf16.msra.mxu0 %v297
    %395 = vmatprep.subr.bf16.mxu0 %v300
    %396 = vmatpush1.bf16.msra.mxu0 %v299
    %397 = vmatprep.subr.bf16.mxu0 %v302
    %398 = vmatpush1.bf16.msra.mxu0 %v301
    %399 = vmatprep.subr.bf16.mxu0 %v304
    %400 = vmatpush1.bf16.msra.mxu0 %v303
    %401 = vmatprep.subr.bf16.mxu0 %v306
    %402 = vmatpush1.bf16.msra.mxu0 %v305
    %403 = vmatprep.subr.bf16.mxu0 %v308
    %404 = vmatpush1.bf16.msra.mxu0 %v307
    %405 = vmatprep.subr.bf16.mxu0 %v310
    %406 = vmatpush1.bf16.msra.mxu0 %v309
    %407 = vmatprep.mubr.bf16.mxu0 %v130
    %408 = vmatmul.mubr.bf16.gmra.mrb[0].mxu0 %v123
    %v409 = vpop.f32.mrb[0].mxu0
    %v410 = vadd.f32 0.0, %v409
    %v411 = vpop.f32.mrb[0].mxu0
    %v412 = vadd.f32 0.0, %v411
    %v413 = vpop.f32.mrb[0].mxu0
    %v414 = vpop.f32.mrb[0].mxu0
    %415 = vdwg.mxu0
    %416 = vmatprep.subr.bf16.mxu0 %v312
    %417 = vmatpush1.bf16.msra.mxu0 %v311
    %418 = vmatprep.subr.bf16.mxu0 %v314
    %419 = vmatpush1.bf16.msra.mxu0 %v313
    %420 = vmatprep.subr.bf16.mxu0 %v316
    %421 = vmatpush1.bf16.msra.mxu0 %v315
    %422 = vmatprep.subr.bf16.mxu0 %v318
    %423 = vmatpush1.bf16.msra.mxu0 %v317
    %424 = vmatprep.subr.bf16.mxu0 %v320
    %425 = vmatpush1.bf16.msra.mxu0 %v319
    %426 = vmatprep.subr.bf16.mxu0 %v322
    %427 = vmatpush1.bf16.msra.mxu0 %v321
    %428 = vmatprep.subr.bf16.mxu0 %v324
    %429 = vmatpush1.bf16.msra.mxu0 %v323
    %430 = vmatprep.subr.bf16.mxu0 %v326
    %431 = vmatpush1.bf16.msra.mxu0 %v325
    %432 = vmatprep.subr.bf16.mxu0 0
    %433 = vmatpush1.bf16.msra.mxu0 0
    %434 = vmatprep.subr.bf16.mxu0 0
    %435 = vmatpush1.bf16.msra.mxu0 0
    %436 = vmatprep.subr.bf16.mxu0 0
    %437 = vmatpush1.bf16.msra.mxu0 0
    %438 = vmatprep.subr.bf16.mxu0 0
    %439 = vmatpush1.bf16.msra.mxu0 0
    %440 = vmatprep.subr.bf16.mxu0 0
    %441 = vmatpush1.bf16.msra.mxu0 0
    %442 = vmatprep.subr.bf16.mxu0 0
    %443 = vmatpush1.bf16.msra.mxu0 0
    %444 = vmatprep.subr.bf16.mxu0 0
    %445 = vmatpush1.bf16.msra.mxu0 0
    %446 = vmatprep.subr.bf16.mxu0 0
    %447 = vmatpush1.bf16.msra.mxu0 0
    %448 = vmatprep.mubr.bf16.mxu0 0
    %449 = vmatmul.mubr.bf16.gmra.mrb[0].mxu0 %v131
    %v450 = vpop.f32.mrb[0].mxu0
    %v451 = vadd.f32 %v410, %v450
    %v452 = vpop.f32.mrb[0].mxu0
    %v453 = vadd.f32 %v412, %v452
    %v454 = vpop.f32.mrb[0].mxu0
    %v455 = vpop.f32.mrb[0].mxu0
    %456 = vdwg.mxu0
    %v459 = vcombine.low %v451, %v453
    %v461 = vunpack.c.l.s4 1983009808
    %v462 = vunpack.c.0.s8 %v461
    %v463 = vlaneseq
    %v464 = vshrl.u32 %v463, 7
    %v465 = vsub.s32 %v462, %v464
    %v466 = vrot.slane %v459, %v465
    %v468 = vadd.f32 %v58, %v466
    %469 = vst [vmem:[#allocation2] sm:$0xf] %v468
    // Predicated region
    $region30: #{model_forward.6} parent=1 // pred_check
      %p470 = pneg %p53
    $region31: #{model_forward.6} parent=1 // pred_check_branch
      %472 = sbr.rel (%p470) target = $region33
    $region32: #{model_forward.6} parent=1 // pred_region
      %v473 = vld [vmem:[#allocation2] sm:$0xf]
      %v474 = vld [vmem:[#allocation8] sm:$0x3]
      %v476 = vlaneseq
      %v477 = vshrl.u32 %v476, 7
      %v478 = vsub.s32 0, %v477
      %v479 = vrot.slane %v474, %v478
      %v480 = vlaneseq
      %v481 = vshrl.u32 %v480, 7
      %v482 = vsub.s32 1, %v481
      %v483 = vrot.slane %v474, %v482
      %v484 = vcombine.low %v479, %v483
      %v486 = vunpack.c.l.s4 1983009808
      %v487 = vunpack.c.0.s8 %v486
      %v488 = vlaneseq
      %v489 = vshrl.u32 %v488, 7
      %v490 = vsub.s32 %v487, %v489
      %v491 = vrot.slane %v484, %v490
      %v493 = vadd.f32 %v473, %v491
      %vm494 = vcmp.gt.f32.partialorder %v493, 0.0
      %v495 = vmin.f32 %v493, 0.0
      %v496 = vmul.f32 %v495, 1.442695
      %v497 = vpow.pop %v496
      %v498 = vsub.f32 %v497, 1.0
      %v499 = vsel %vm494, %v493, %v498
      %v502 = vunpack.c.l.s4 1983009808
      %v503 = vunpack.c.0.s8 %v502
      %v504 = vlaneseq
      %v505 = vshrl.u32 %v504, 7
      %v506 = vsub.s32 %v503, %v505
      %v507 = vrot.slane %v499, %v506
      %v508 = vcombine.high %v507, %v507
      %v511 = vpack.c.bf16 %v507, %v507
      %v512 = vpack.c.bf16 %v508, %v508
      %v515 = vcombine.low %v511, %v512
      %v517 = vunpack.c.l.s4 1966171168
      %v518 = vunpack.c.0.s8 %v517
      %v519 = vlaneseq
      %v520 = vshrl.u32 %v519, 7
      %v521 = vsub.s32 %v518, %v520
      %v522 = vrot.slane %v515, %v521
      %v524 = vunpack.c.l.s4 1966171168
      %v525 = vunpack.c.0.s8 %v524
      %v526 = vlaneseq
      %v527 = vshrl.u32 %v526, 7
      %v528 = vsub.s32 %v525, %v527
      %v529 = vrot.slane %v522, %v528
      %531 = vst [vmem:[#allocation9] sm:$0x3] %v529
    $region33: #{model_forward.6} parent=1 // pred_fallthru
      _
    // Predicated region
    $region34: #{model_forward.6} parent=1 // pred_check
      _
    $region35: #{model_forward.6} parent=1 // pred_check_branch
      %533 = sbr.rel (0) target = $region37
    $region36: #{model_forward.6} parent=1 // pred_region
      %s535 = ssub.s32 32, 32
      %536 = vsyncadd [#allocation5], %s535
      %s538 = sshll.u32 [#allocation9], 4
      %s539 = int_to_ptr.vmem [resolvable:$true] %s538
      %541 = dma.vmem_to_hbm [thread:$0]  %s539, 32, %s3, [#allocation5]
    $region37: #{model_forward.6} parent=1 // pred_fallthru
      _
    // Predicated region
    $region38: #{model_forward.6} parent=1 // pred_check
      _
    $region39: #{model_forward.6} parent=1 // pred_check_branch
      %543 = sbr.rel (0) target = $region41
    $region40: #{model_forward.6} parent=1 // pred_region
      %544 = dma.done [#allocation5], 32
    $region41: #{model_forward.6} parent=1 // pred_fallthru
      _
    %545 = vsyncpa [#allocation4], 1
    %546 = vsyncpa [#allocation7], 1
    %547 = vsyncpa [#allocation5], 1

// kernel: model_forward.7
$region0: #{model_forward.7}
  #allocation0 [shape = 'u32[]', space=smem, size = 0x4, offset = 0x4, fixed_abs, tag = 'smem constant byte address 0x4 - core index']
  #allocation1 [shape = 'u32[144,128]{1,0:T(1,128)}', space=vmem, size = 0x12000, scoped, tag = 'internal scratch']
  #allocation2 [shape = 'f32[2,32]{1,0:T(2,128)}', space=vmem, size = 0x400, scoped, tag = 'scratch operand']
  #allocation3 [shape = 'f32[1,1]{1,0:T(1,128)S(6)}', space=smem, size = 0x200, scoped, tag = 'scoped memory for model_forward.7']
  %s0 = inlined_call_operand.hbm [shape: bf16[2,256], index: 0, kind: input, shape index: {}]
  %s1 = inlined_call_operand.hbm [shape: bf16[256,32], index: 1, kind: input, shape index: {}]
  %s2 = inlined_call_operand.hbm [shape: f32[1,32], index: 2, kind: input, shape index: {}]
  %s3 = inlined_call_operand.hbm [shape: f32[1,32], index: 3, kind: input, shape index: {}]
  %s4 = inlined_call_operand.<no memory space> [shape: f32[1,1], index: 4, kind: input, shape index: {}]
  %s5 = inlined_call_operand.hbm [shape: f32[2,1], index: 5, kind: output, shape index: {}]
  %s6 = sld [smem:[#allocation0]]
  $region54: #{model_forward.7} parent=0
    _
  %s8 = ssub.s32 1, %s6
  %s9 = scalar_select 0, %s8, %s6
  %10 = sst [smem:[#allocation3]] %s4
  $region1: #{model_forward.7} parent=0
    #allocation4 [shape = 'u8[1024]{0}', space=vmem, size = 0x400, scoped, tag = 'input window, operand 0, single buffered']
    #allocation5 [shape = 's32[1]{0}', space=sflag, size = 0x4, scoped, tag = 'scoped memory for model_forward.7']
    #allocation6 [shape = 's32[1]{0}', space=sflag, size = 0x4, scoped, tag = 'scoped memory for model_forward.7']
    #allocation7 [shape = 'u8[65536]{0}', space=vmem, size = 0x10000, scoped, tag = 'input window, operand 1, single buffered']
    #allocation8 [shape = 's32[1]{0}', space=sflag, size = 0x4, scoped, tag = 'scoped memory for model_forward.7']
    #allocation9 [shape = 'u8[512]{0}', space=vmem, size = 0x400, scoped, tag = 'input window, operand 2, single buffered']
    #allocation10 [shape = 'u8[512]{0}', space=vmem, size = 0x400, scoped, tag = 'input window, operand 3, single buffered']
    #allocation11 [shape = 's32[1]{0}', space=sflag, size = 0x4, scoped, tag = 'scoped memory for model_forward.7']
    #allocation12 [shape = 'u8[1024]{0}', space=vmem, size = 0x400, scoped, tag = 'output window, operand 0, single buffered']
    %11 = vsyncpa [#allocation5], 0
    %12 = vsyncpa [#allocation8], 0
    %13 = vsyncpa [#allocation11], 0
    %14 = vsyncpa [#allocation6], 0
    // Predicated region
    $region2: #{model_forward.7} parent=1 // pred_check
      _
    $region3: #{model_forward.7} parent=1 // pred_check_branch
      %16 = sbr.rel (0) target = $region5
    $region4: #{model_forward.7} parent=1 // pred_region
      %s18 = ssub.s32 32, 32
      %19 = vsyncadd [#allocation5], %s18
      %s21 = sshll.u32 [#allocation4], 4
      %s22 = int_to_ptr.vmem [resolvable:$true] %s21
      %24 = dma.hbm_to_vmem [thread:$0]  %s0, 32, %s22, [#allocation5]
    $region5: #{model_forward.7} parent=1 // pred_fallthru
      _
    // Predicated region
    $region6: #{model_forward.7} parent=1 // pred_check
      _
    $region7: #{model_forward.7} parent=1 // pred_check_branch
      %26 = sbr.rel (0) target = $region9
    $region8: #{model_forward.7} parent=1 // pred_region
      %s28 = ssub.s32 2048, 2048
      %29 = vsyncadd [#allocation8], %s28
      %s30 = sshll.u32 [#allocation7], 4
      %s31 = int_to_ptr.vmem [resolvable:$true] %s30
      %36 = dma.hbm_to_vmem [thread:$0]  %s1, 2048, %s31, [#allocation8], 64, 64, 4
    $region9: #{model_forward.7} parent=1 // pred_fallthru
      _
    // Predicated region
    $region10: #{model_forward.7} parent=1 // pred_check
      _
    $region11: #{model_forward.7} parent=1 // pred_check_branch
      %38 = sbr.rel (0) target = $region13
    $region12: #{model_forward.7} parent=1 // pred_region
      %s40 = ssub.s32 16, 16
      %41 = vsyncadd [#allocation8], %s40
      %s43 = sshll.u32 [#allocation9], 4
      %s44 = int_to_ptr.vmem [resolvable:$true] %s43
      %46 = dma.hbm_to_vmem [thread:$0]  %s2, 16, %s44, [#allocation8]
    $region13: #{model_forward.7} parent=1 // pred_fallthru
      _
    // Predicated region
    $region14: #{model_forward.7} parent=1 // pred_check
      _
    $region15: #{model_forward.7} parent=1 // pred_check_branch
      %48 = sbr.rel (0) target = $region17
    $region16: #{model_forward.7} parent=1 // pred_region
      %s50 = ssub.s32 16, 16
      %51 = vsyncadd [#allocation11], %s50
      %s53 = sshll.u32 [#allocation10], 4
      %s54 = int_to_ptr.vmem [resolvable:$true] %s53
      %56 = dma.hbm_to_vmem [thread:$0]  %s3, 16, %s54, [#allocation11]
    $region17: #{model_forward.7} parent=1 // pred_fallthru
      _
    // Predicated region
    $region18: #{model_forward.7} parent=1 // pred_check
      _
    $region19: #{model_forward.7} parent=1 // pred_check_branch
      %58 = sbr.rel (0) target = $region21
    $region20: #{model_forward.7} parent=1 // pred_region
      _
    $region21: #{model_forward.7} parent=1 // pred_fallthru
      _
    // Predicated region
    $region22: #{model_forward.7} parent=1 // pred_check
      _
    $region23: #{model_forward.7} parent=1 // pred_check_branch
      %60 = sbr.rel (0) target = $region25
    $region24: #{model_forward.7} parent=1 // pred_region
      %61 = dma.done [#allocation5], 32
    $region25: #{model_forward.7} parent=1 // pred_fallthru
      _
    // Predicated region
    $region26: #{model_forward.7} parent=1 // pred_check
      _
    $region27: #{model_forward.7} parent=1 // pred_check_branch
      %63 = sbr.rel (0) target = $region29
    $region28: #{model_forward.7} parent=1 // pred_region
      %64 = dma.done [#allocation8], 2048
    $region29: #{model_forward.7} parent=1 // pred_fallthru
      _
    // Predicated region
    $region30: #{model_forward.7} parent=1 // pred_check
      _
    $region31: #{model_forward.7} parent=1 // pred_check_branch
      %66 = sbr.rel (0) target = $region33
    $region32: #{model_forward.7} parent=1 // pred_region
      %67 = dma.done [#allocation8], 16
    $region33: #{model_forward.7} parent=1 // pred_fallthru
      _
    // Predicated region
    $region34: #{model_forward.7} parent=1 // pred_check
      _
    $region35: #{model_forward.7} parent=1 // pred_check_branch
      %69 = sbr.rel (0) target = $region37
    $region36: #{model_forward.7} parent=1 // pred_region
      %70 = dma.done [#allocation11], 16
    $region37: #{model_forward.7} parent=1 // pred_fallthru
      _
    %p72 = scmp.eq.s32.totalorder 0, 0
    // Predicated region
    $region38: #{model_forward.7} parent=1 // pred_check
      %p73 = pneg %p72
    $region39: #{model_forward.7} parent=1 // pred_check_branch
      %75 = sbr.rel (%p73) target = $region41
    $region40: #{model_forward.7} parent=1 // pred_region
      %vm76 = vcmask 254976
      %77 = vst.msk [vmem:[#allocation2] sm:$0x3] %vm76, 0.0
    $region41: #{model_forward.7} parent=1 // pred_fallthru
      _
    %v78 = vld [vmem:[#allocation2] sm:$0x3]
    %v79 = vld [vmem:[#allocation4] sm:$0x3]
    %v80 = vld [vmem:[#allocation7] sm:$0xf]
    %v81 = vld [vmem:[#allocation7 + $0x4] sm:$0xf]
    %v82 = vld [vmem:[#allocation7 + $0x8] sm:$0xf]
    %v83 = vld [vmem:[#allocation7 + $0xc] sm:$0xf]
    %v84 = vld [vmem:[#allocation7 + $0x10] sm:$0xf]
    %v85 = vld [vmem:[#allocation7 + $0x14] sm:$0xf]
    %v86 = vld [vmem:[#allocation7 + $0x18] sm:$0xf]
    %v87 = vld [vmem:[#allocation7 + $0x1c] sm:$0xf]
    %v88 = vld [vmem:[#allocation7 + $0x20] sm:$0xf]
    %v89 = vld [vmem:[#allocation7 + $0x24] sm:$0xf]
    %v90 = vld [vmem:[#allocation7 + $0x28] sm:$0xf]
    %v91 = vld [vmem:[#allocation7 + $0x2c] sm:$0xf]
    %v92 = vld [vmem:[#allocation7 + $0x30] sm:$0xf]
    %v93 = vld [vmem:[#allocation7 + $0x34] sm:$0xf]
    %v94 = vld [vmem:[#allocation7 + $0x38] sm:$0xf]
    %v95 = vld [vmem:[#allocation7 + $0x3c] sm:$0xf]
    %v96 = vld [vmem:[#allocation7 + $0x40] sm:$0xf]
    %v97 = vld [vmem:[#allocation7 + $0x44] sm:$0xf]
    %v98 = vld [vmem:[#allocation7 + $0x48] sm:$0xf]
    %v99 = vld [vmem:[#allocation7 + $0x4c] sm:$0xf]
    %v100 = vld [vmem:[#allocation7 + $0x50] sm:$0xf]
    %v101 = vld [vmem:[#allocation7 + $0x54] sm:$0xf]
    %v102 = vld [vmem:[#allocation7 + $0x58] sm:$0xf]
    %v103 = vld [vmem:[#allocation7 + $0x5c] sm:$0xf]
    %v104 = vld [vmem:[#allocation7 + $0x60] sm:$0xf]
    %v105 = vld [vmem:[#allocation7 + $0x64] sm:$0xf]
    %v106 = vld [vmem:[#allocation7 + $0x68] sm:$0xf]
    %v107 = vld [vmem:[#allocation7 + $0x6c] sm:$0xf]
    %v108 = vld [vmem:[#allocation7 + $0x70] sm:$0xf]
    %v109 = vld [vmem:[#allocation7 + $0x74] sm:$0xf]
    %v110 = vld [vmem:[#allocation7 + $0x78] sm:$0xf]
    %v111 = vld [vmem:[#allocation7 + $0x7c] sm:$0xf]
    %v114 = vunpack.c.l.s4 1966171168
    %v115 = vunpack.c.0.s8 %v114
    %v116 = vlaneseq
    %v117 = vshrl.u32 %v116, 7
    %v118 = vsub.s32 %v115, %v117
    %v119 = vrot.slane %v79, %v118
    %v120 = vcombine.high %v119, %v119
    %v122 = vunpack.c.l.s4 1966171168
    %v123 = vunpack.c.0.s8 %v122
    %v124 = vlaneseq
    %v125 = vshrl.u32 %v124, 7
    %v126 = vsub.s32 %v123, %v125
    %v127 = vrot.slane %v119, %v126
    %v129 = vunpack.c.l.s4 1966171168
    %v130 = vunpack.c.0.s8 %v129
    %v131 = vlaneseq
    %v132 = vshrl.u32 %v131, 7
    %v133 = vsub.s32 %v130, %v132
    %v134 = vrot.slane %v120, %v133
    %v169 = vunpack.c.l.b16 %v80
    %v170 = vunpack.c.l.b16 %v81
    %v171 = vunpack.c.l.b16 %v82
    %v172 = vunpack.c.l.b16 %v83
    %v173 = vunpack.c.l.b16 %v84
    %v174 = vunpack.c.l.b16 %v85
    %v175 = vunpack.c.l.b16 %v86
    %v176 = vunpack.c.l.b16 %v87
    %v177 = vunpack.c.l.b16 %v88
    %v178 = vunpack.c.l.b16 %v89
    %v179 = vunpack.c.l.b16 %v90
    %v180 = vunpack.c.l.b16 %v91
    %v181 = vunpack.c.l.b16 %v92
    %v182 = vunpack.c.l.b16 %v93
    %v183 = vunpack.c.l.b16 %v94
    %v184 = vunpack.c.l.b16 %v95
    %v185 = vunpack.c.l.b16 %v96
    %v186 = vunpack.c.l.b16 %v97
    %v187 = vunpack.c.l.b16 %v98
    %v188 = vunpack.c.l.b16 %v99
    %v189 = vunpack.c.l.b16 %v100
    %v190 = vunpack.c.l.b16 %v101
    %v191 = vunpack.c.l.b16 %v102
    %v192 = vunpack.c.l.b16 %v103
    %v193 = vunpack.c.l.b16 %v104
    %v194 = vunpack.c.l.b16 %v105
    %v195 = vunpack.c.l.b16 %v106
    %v196 = vunpack.c.l.b16 %v107
    %v197 = vunpack.c.l.b16 %v108
    %v198 = vunpack.c.l.b16 %v109
    %v199 = vunpack.c.l.b16 %v110
    %v200 = vunpack.c.l.b16 %v111
    %v201 = vpack.c.b16 %v170, %v169
    %v202 = vpack.c.b16 %v172, %v171
    %v203 = vpack.c.b16 %v174, %v173
    %v204 = vpack.c.b16 %v176, %v175
    %v205 = vpack.c.b16 %v178, %v177
    %v206 = vpack.c.b16 %v180, %v179
    %v207 = vpack.c.b16 %v182, %v181
    %v208 = vpack.c.b16 %v184, %v183
    %v209 = vpack.c.b16 %v186, %v185
    %v210 = vpack.c.b16 %v188, %v187
    %v211 = vpack.c.b16 %v190, %v189
    %v212 = vpack.c.b16 %v192, %v191
    %v213 = vpack.c.b16 %v194, %v193
    %v214 = vpack.c.b16 %v196, %v195
    %v215 = vpack.c.b16 %v198, %v197
    %v216 = vpack.c.b16 %v200, %v199
    %233 = vmatprep.subr.bf16.mxu0 0
    %234 = vmatpush1.bf16.msra.mxu0 %v201
    %235 = vmatprep.subr.bf16.mxu0 0
    %236 = vmatpush1.bf16.msra.mxu0 %v202
    %237 = vmatprep.subr.bf16.mxu0 0
    %238 = vmatpush1.bf16.msra.mxu0 %v203
    %239 = vmatprep.subr.bf16.mxu0 0
    %240 = vmatpush1.bf16.msra.mxu0 %v204
    %241 = vmatprep.subr.bf16.mxu0 0
    %242 = vmatpush1.bf16.msra.mxu0 %v205
    %243 = vmatprep.subr.bf16.mxu0 0
    %244 = vmatpush1.bf16.msra.mxu0 %v206
    %245 = vmatprep.subr.bf16.mxu0 0
    %246 = vmatpush1.bf16.msra.mxu0 %v207
    %247 = vmatprep.subr.bf16.mxu0 0
    %248 = vmatpush1.bf16.msra.mxu0 %v208
    %249 = vmatprep.subr.bf16.mxu0 0
    %250 = vmatpush1.bf16.msra.mxu0 %v209
    %251 = vmatprep.subr.bf16.mxu0 0
    %252 = vmatpush1.bf16.msra.mxu0 %v210
    %253 = vmatprep.subr.bf16.mxu0 0
    %254 = vmatpush1.bf16.msra.mxu0 %v211
    %255 = vmatprep.subr.bf16.mxu0 0
    %256 = vmatpush1.bf16.msra.mxu0 %v212
    %257 = vmatprep.subr.bf16.mxu0 0
    %258 = vmatpush1.bf16.msra.mxu0 %v213
    %259 = vmatprep.subr.bf16.mxu0 0
    %260 = vmatpush1.bf16.msra.mxu0 %v214
    %261 = vmatprep.subr.bf16.mxu0 0
    %262 = vmatpush1.bf16.msra.mxu0 %v215
    %263 = vmatprep.subr.bf16.mxu0 0
    %264 = vmatpush1.bf16.msra.mxu0 %v216
    %265 = vmatprep.mubr.bf16.mxu0 %v134
    %266 = vmatmul.mubr.bf16.gmra.mrb[0].mxu0 %v127
    %v267 = vpop.f32.mrb[0].mxu0
    %v268 = vadd.f32 0.0, %v267
    %v269 = vpop.f32.mrb[0].mxu0
    %v270 = vpop.f32.mrb[0].mxu0
    %v271 = vpop.f32.mrb[0].mxu0
    %272 = vdwg.mxu0
    %v273 = vadd.f32 %v78, %v268
    %vm274 = vcmask 254976
    %275 = vst.msk [vmem:[#allocation2] sm:$0x3] %vm274, %v273
    // Predicated region
    $region42: #{model_forward.7} parent=1 // pred_check
      %p276 = pneg %p72
    $region43: #{model_forward.7} parent=1 // pred_check_branch
      %278 = sbr.rel (%p276) target = $region45
    $region44: #{model_forward.7} parent=1 // pred_region
      %v279 = vld [vmem:[#allocation2] sm:$0x3]
      %v280 = vld [vmem:[#allocation9] sm:$0x1]
      %v282 = vlaneseq
      %v283 = vshrl.u32 %v282, 7
      %v284 = vsub.s32 0, %v283
      %v285 = vrot.slane %v280, %v284
      %v287 = vadd.f32 %v279, %v285
      %vm288 = vcmp.gt.f32.partialorder %v287, 0.0
      %v289 = vmin.f32 %v287, 0.0
      %v290 = vmul.f32 %v289, 1.442695
      %v291 = vpow.pop %v290
      %v292 = vsub.f32 %v291, 1.0
      %v293 = vsel %vm288, %v287, %v292
      %v294 = vld [vmem:[#allocation10] sm:$0x1]
      %v296 = vlaneseq
      %v297 = vshrl.u32 %v296, 7
      %v298 = vsub.s32 0, %v297
      %v299 = vrot.slane %v294, %v298
      %v301 = vmul.f32 %v293, %v299
      %v302 = vsel %vm274, %v301, 0.0
      %303 = vadd.xlane.f32.xlu0 %v302
      %v304 = vpop.xlane.xlu0 %303
      %s305 = sld [smem:[#allocation3]]
      %v306 = vstv %s305
      %v307 = vadd.f32 %v304, %v306
      %vm308 = vcmask 1024
      %309 = vst.msk [vmem:[#allocation12] sm:$0x3] %vm308, %v307
    $region45: #{model_forward.7} parent=1 // pred_fallthru
      _
    // Predicated region
    $region46: #{model_forward.7} parent=1 // pred_check
      _
    $region47: #{model_forward.7} parent=1 // pred_check_branch
      %311 = sbr.rel (0) target = $region49
    $region48: #{model_forward.7} parent=1 // pred_region
      %s313 = ssub.s32 32, 32
      %314 = vsyncadd [#allocation6], %s313
      %s316 = sshll.u32 [#allocation12], 4
      %s317 = int_to_ptr.vmem [resolvable:$true] %s316
      %319 = dma.vmem_to_hbm [thread:$0]  %s317, 32, %s5, [#allocation6]
    $region49: #{model_forward.7} parent=1 // pred_fallthru
      _
    // Predicated region
    $region50: #{model_forward.7} parent=1 // pred_check
      _
    $region51: #{model_forward.7} parent=1 // pred_check_branch
      %321 = sbr.rel (0) target = $region53
    $region52: #{model_forward.7} parent=1 // pred_region
      %322 = dma.done [#allocation6], 32
    $region53: #{model_forward.7} parent=1 // pred_fallthru
      _
    %323 = vsyncpa [#allocation5], 1
    %324 = vsyncpa [#allocation8], 1
    %325 = vsyncpa [#allocation11], 1
    %326 = vsyncpa [#allocation6], 1

// kernel: model_forward.5
$region0: #{model_forward.5}
  #allocation0 [shape = 'u32[]', space=smem, size = 0x4, offset = 0x4, fixed_abs, tag = 'smem constant byte address 0x4 - core index']
  #allocation1 [shape = 'u32[144,128]{1,0:T(1,128)}', space=vmem, size = 0x12000, scoped, tag = 'internal scratch']
  #allocation2 [shape = 'f32[2,384]{1,0:T(2,128)}', space=vmem, size = 0xc00, scoped, tag = 'scratch operand']
  %s0 = inlined_call_operand.hbm [shape: bf16[2,768], index: 0, kind: input, shape index: {}]
  %s1 = inlined_call_operand.hbm [shape: bf16[768,384], index: 1, kind: input, shape index: {}]
  %s2 = inlined_call_operand.hbm [shape: f32[1,384], index: 2, kind: input, shape index: {}]
  %s3 = inlined_call_operand.hbm [shape: bf16[2,384], index: 3, kind: output, shape index: {}]
  %s4 = sld [smem:[#allocation0]]
  $region42: #{model_forward.5} parent=0
    _
  %s6 = ssub.s32 1, %s4
  %s7 = scalar_select 0, %s6, %s4
  $region1: #{model_forward.5} parent=0
    #allocation3 [shape = 'u8[3072]{0}', space=vmem, size = 0xc00, scoped, tag = 'input window, operand 0, single buffered']
    #allocation4 [shape = 's32[1]{0}', space=sflag, size = 0x4, scoped, tag = 'scoped memory for model_forward.5']
    #allocation5 [shape = 's32[1]{0}', space=sflag, size = 0x4, scoped, tag = 'scoped memory for model_forward.5']
    #allocation6 [shape = 'u8[589824]{0}', space=vmem, size = 0x90000, scoped, tag = 'input window, operand 1, single buffered']
    #allocation7 [shape = 's32[1]{0}', space=sflag, size = 0x4, scoped, tag = 'scoped memory for model_forward.5']
    #allocation8 [shape = 'u8[1536]{0}', space=vmem, size = 0x800, scoped, tag = 'input window, operand 2, single buffered']
    #allocation9 [shape = 'u8[1536]{0}', space=vmem, size = 0x800, scoped, tag = 'output window, operand 0, single buffered']
    %8 = vsyncpa [#allocation4], 0
    %9 = vsyncpa [#allocation7], 0
    %10 = vsyncpa [#allocation5], 0
    // Predicated region
    $region2: #{model_forward.5} parent=1 // pred_check
      _
    $region3: #{model_forward.5} parent=1 // pred_check_branch
      %12 = sbr.rel (0) target = $region5
    $region4: #{model_forward.5} parent=1 // pred_region
      %s14 = ssub.s32 96, 96
      %15 = vsyncadd [#allocation4], %s14
      %s17 = sshll.u32 [#allocation3], 4
      %s18 = int_to_ptr.vmem [resolvable:$true] %s17
      %20 = dma.hbm_to_vmem [thread:$0]  %s0, 96, %s18, [#allocation4]
    $region5: #{model_forward.5} parent=1 // pred_fallthru
      _
    // Predicated region
    $region6: #{model_forward.5} parent=1 // pred_check
      _
    $region7: #{model_forward.5} parent=1 // pred_check_branch
      %22 = sbr.rel (0) target = $region9
    $region8: #{model_forward.5} parent=1 // pred_region
      %s24 = ssub.s32 18432, 18432
      %25 = vsyncadd [#allocation7], %s24
      %s26 = sshll.u32 [#allocation6], 4
      %s27 = int_to_ptr.vmem [resolvable:$true] %s26
      %32 = dma.hbm_to_vmem [thread:$0]  %s1, 18432, %s27, [#allocation7], 192, 192, 12
    $region9: #{model_forward.5} parent=1 // pred_fallthru
      _
    // Predicated region
    $region10: #{model_forward.5} parent=1 // pred_check
      _
    $region11: #{model_forward.5} parent=1 // pred_check_branch
      %34 = sbr.rel (0) target = $region13
    $region12: #{model_forward.5} parent=1 // pred_region
      %s36 = ssub.s32 48, 48
      %37 = vsyncadd [#allocation7], %s36
      %s39 = sshll.u32 [#allocation8], 4
      %s40 = int_to_ptr.vmem [resolvable:$true] %s39
      %42 = dma.hbm_to_vmem [thread:$0]  %s2, 48, %s40, [#allocation7]
    $region13: #{model_forward.5} parent=1 // pred_fallthru
      _
    // Predicated region
    $region14: #{model_forward.5} parent=1 // pred_check
      _
    $region15: #{model_forward.5} parent=1 // pred_check_branch
      %44 = sbr.rel (0) target = $region17
    $region16: #{model_forward.5} parent=1 // pred_region
      %45 = dma.done [#allocation4], 96
    $region17: #{model_forward.5} parent=1 // pred_fallthru
      _
    // Predicated region
    $region18: #{model_forward.5} parent=1 // pred_check
      _
    $region19: #{model_forward.5} parent=1 // pred_check_branch
      %47 = sbr.rel (0) target = $region21
    $region20: #{model_forward.5} parent=1 // pred_region
      %48 = dma.done [#allocation7], 18432
    $region21: #{model_forward.5} parent=1 // pred_fallthru
      _
    // Predicated region
    $region22: #{model_forward.5} parent=1 // pred_check
      _
    $region23: #{model_forward.5} parent=1 // pred_check_branch
      %50 = sbr.rel (0) target = $region25
    $region24: #{model_forward.5} parent=1 // pred_region
      %51 = dma.done [#allocation7], 48
    $region25: #{model_forward.5} parent=1 // pred_fallthru
      _
    %p53 = scmp.eq.s32.totalorder 0, 0
    // Predicated region
    $region26: #{model_forward.5} parent=1 // pred_check
      %p54 = pneg %p53
    $region27: #{model_forward.5} parent=1 // pred_check_branch
      %56 = sbr.rel (%p54) target = $region29
    $region28: #{model_forward.5} parent=1 // pred_region
      %57 = vst [vmem:[#allocation2] sm:$0x3f] 0.0
    $region29: #{model_forward.5} parent=1 // pred_fallthru
      _
    %v58 = vld [vmem:[#allocation2] sm:$0x3f]
    %v59 = vld [vmem:[#allocation3] sm:$0x3f]
    %v60 = vld [vmem:[#allocation6] sm:$0xff]
    %v61 = vld [vmem:[#allocation6 + $0x8] sm:$0xf]
    %v62 = vld [vmem:[#allocation6 + $0xc] sm:$0xff]
    %v63 = vld [vmem:[#allocation6 + $0x14] sm:$0xf]
    %v64 = vld [vmem:[#allocation6 + $0x18] sm:$0xff]
    %v65 = vld [vmem:[#allocation6 + $0x20] sm:$0xf]
    %v66 = vld [vmem:[#allocation6 + $0x24] sm:$0xff]
    %v67 = vld [vmem:[#allocation6 + $0x2c] sm:$0xf]
    %v68 = vld [vmem:[#allocation6 + $0x30] sm:$0xff]
    %v69 = vld [vmem:[#allocation6 + $0x38] sm:$0xf]
    %v70 = vld [vmem:[#allocation6 + $0x3c] sm:$0xff]
    %v71 = vld [vmem:[#allocation6 + $0x44] sm:$0xf]
    %v72 = vld [vmem:[#allocation6 + $0x48] sm:$0xff]
    %v73 = vld [vmem:[#allocation6 + $0x50] sm:$0xf]
    %v74 = vld [vmem:[#allocation6 + $0x54] sm:$0xff]
    %v75 = vld [vmem:[#allocation6 + $0x5c] sm:$0xf]
    %v76 = vld [vmem:[#allocation6 + $0x60] sm:$0xff]
    %v77 = vld [vmem:[#allocation6 + $0x68] sm:$0xf]
    %v78 = vld [vmem:[#allocation6 + $0x6c] sm:$0xff]
    %v79 = vld [vmem:[#allocation6 + $0x74] sm:$0xf]
    %v80 = vld [vmem:[#allocation6 + $0x78] sm:$0xff]
    %v81 = vld [vmem:[#allocation6 + $0x80] sm:$0xf]
    %v82 = vld [vmem:[#allocation6 + $0x84] sm:$0xff]
    %v83 = vld [vmem:[#allocation6 + $0x8c] sm:$0xf]
    %v84 = vld [vmem:[#allocation6 + $0x90] sm:$0xff]
    %v85 = vld [vmem:[#allocation6 + $0x98] sm:$0xf]
    %v86 = vld [vmem:[#allocation6 + $0x9c] sm:$0xff]
    %v87 = vld [vmem:[#allocation6 + $0xa4] sm:$0xf]
    %v88 = vld [vmem:[#allocation6 + $0xa8] sm:$0xff]
    %v89 = vld [vmem:[#allocation6 + $0xb0] sm:$0xf]
    %v90 = vld [vmem:[#allocation6 + $0xb4] sm:$0xff]
    %v91 = vld [vmem:[#allocation6 + $0xbc] sm:$0xf]
    %v92 = vld [vmem:[#allocation6 + $0xc0] sm:$0xff]
    %v93 = vld [vmem:[#allocation6 + $0xc8] sm:$0xf]
    %v94 = vld [vmem:[#allocation6 + $0xcc] sm:$0xff]
    %v95 = vld [vmem:[#allocation6 + $0xd4] sm:$0xf]
    %v96 = vld [vmem:[#allocation6 + $0xd8] sm:$0xff]
    %v97 = vld [vmem:[#allocation6 + $0xe0] sm:$0xf]
    %v98 = vld [vmem:[#allocation6 + $0xe4] sm:$0xff]
    %v99 = vld [vmem:[#allocation6 + $0xec] sm:$0xf]
    %v100 = vld [vmem:[#allocation6 + $0xf0] sm:$0xff]
    %v101 = vld [vmem:[#allocation6 + $0xf8] sm:$0xf]
    %v102 = vld [vmem:[#allocation6 + $0xfc] sm:$0xff]
    %v103 = vld [vmem:[#allocation6 + $0x104] sm:$0xf]
    %v104 = vld [vmem:[#allocation6 + $0x108] sm:$0xff]
    %v105 = vld [vmem:[#allocation6 + $0x110] sm:$0xf]
    %v106 = vld [vmem:[#allocation6 + $0x114] sm:$0xff]
    %v107 = vld [vmem:[#allocation6 + $0x11c] sm:$0xf]
    %v108 = vld [vmem:[#allocation6 + $0x120] sm:$0xff]
    %v109 = vld [vmem:[#allocation6 + $0x128] sm:$0xf]
    %v110 = vld [vmem:[#allocation6 + $0x12c] sm:$0xff]
    %v111 = vld [vmem:[#allocation6 + $0x134] sm:$0xf]
    %v112 = vld [vmem:[#allocation6 + $0x138] sm:$0xff]
    %v113 = vld [vmem:[#allocation6 + $0x140] sm:$0xf]
    %v114 = vld [vmem:[#allocation6 + $0x144] sm:$0xff]
    %v115 = vld [vmem:[#allocation6 + $0x14c] sm:$0xf]
    %v116 = vld [vmem:[#allocation6 + $0x150] sm:$0xff]
    %v117 = vld [vmem:[#allocation6 + $0x158] sm:$0xf]
    %v118 = vld [vmem:[#allocation6 + $0x15c] sm:$0xff]
    %v119 = vld [vmem:[#allocation6 + $0x164] sm:$0xf]
    %v120 = vld [vmem:[#allocation6 + $0x168] sm:$0xff]
    %v121 = vld [vmem:[#allocation6 + $0x170] sm:$0xf]
    %v122 = vld [vmem:[#allocation6 + $0x174] sm:$0xff]
    %v123 = vld [vmem:[#allocation6 + $0x17c] sm:$0xf]
    %v124 = vld [vmem:[#allocation6 + $0x180] sm:$0xff]
    %v125 = vld [vmem:[#allocation6 + $0x188] sm:$0xf]
    %v126 = vld [vmem:[#allocation6 + $0x18c] sm:$0xff]
    %v127 = vld [vmem:[#allocation6 + $0x194] sm:$0xf]
    %v128 = vld [vmem:[#allocation6 + $0x198] sm:$0xff]
    %v129 = vld [vmem:[#allocation6 + $0x1a0] sm:$0xf]
    %v130 = vld [vmem:[#allocation6 + $0x1a4] sm:$0xff]
    %v131 = vld [vmem:[#allocation6 + $0x1ac] sm:$0xf]
    %v132 = vld [vmem:[#allocation6 + $0x1b0] sm:$0xff]
    %v133 = vld [vmem:[#allocation6 + $0x1b8] sm:$0xf]
    %v134 = vld [vmem:[#allocation6 + $0x1bc] sm:$0xff]
    %v135 = vld [vmem:[#allocation6 + $0x1c4] sm:$0xf]
    %v136 = vld [vmem:[#allocation6 + $0x1c8] sm:$0xff]
    %v137 = vld [vmem:[#allocation6 + $0x1d0] sm:$0xf]
    %v138 = vld [vmem:[#allocation6 + $0x1d4] sm:$0xff]
    %v139 = vld [vmem:[#allocation6 + $0x1dc] sm:$0xf]
    %v140 = vld [vmem:[#allocation6 + $0x1e0] sm:$0xff]
    %v141 = vld [vmem:[#allocation6 + $0x1e8] sm:$0xf]
    %v142 = vld [vmem:[#allocation6 + $0x1ec] sm:$0xff]
    %v143 = vld [vmem:[#allocation6 + $0x1f4] sm:$0xf]
    %v144 = vld [vmem:[#allocation6 + $0x1f8] sm:$0xff]
    %v145 = vld [vmem:[#allocation6 + $0x200] sm:$0xf]
    %v146 = vld [vmem:[#allocation6 + $0x204] sm:$0xff]
    %v147 = vld [vmem:[#allocation6 + $0x20c] sm:$0xf]
    %v148 = vld [vmem:[#allocation6 + $0x210] sm:$0xff]
    %v149 = vld [vmem:[#allocation6 + $0x218] sm:$0xf]
    %v150 = vld [vmem:[#allocation6 + $0x21c] sm:$0xff]
    %v151 = vld [vmem:[#allocation6 + $0x224] sm:$0xf]
    %v152 = vld [vmem:[#allocation6 + $0x228] sm:$0xff]
    %v153 = vld [vmem:[#allocation6 + $0x230] sm:$0xf]
    %v154 = vld [vmem:[#allocation6 + $0x234] sm:$0xff]
    %v155 = vld [vmem:[#allocation6 + $0x23c] sm:$0xf]
    %v156 = vld [vmem:[#allocation6 + $0x240] sm:$0xff]
    %v157 = vld [vmem:[#allocation6 + $0x248] sm:$0xf]
    %v158 = vld [vmem:[#allocation6 + $0x24c] sm:$0xff]
    %v159 = vld [vmem:[#allocation6 + $0x254] sm:$0xf]
    %v160 = vld [vmem:[#allocation6 + $0x258] sm:$0xff]
    %v161 = vld [vmem:[#allocation6 + $0x260] sm:$0xf]
    %v162 = vld [vmem:[#allocation6 + $0x264] sm:$0xff]
    %v163 = vld [vmem:[#allocation6 + $0x26c] sm:$0xf]
    %v164 = vld [vmem:[#allocation6 + $0x270] sm:$0xff]
    %v165 = vld [vmem:[#allocation6 + $0x278] sm:$0xf]
    %v166 = vld [vmem:[#allocation6 + $0x27c] sm:$0xff]
    %v167 = vld [vmem:[#allocation6 + $0x284] sm:$0xf]
    %v168 = vld [vmem:[#allocation6 + $0x288] sm:$0xff]
    %v169 = vld [vmem:[#allocation6 + $0x290] sm:$0xf]
    %v170 = vld [vmem:[#allocation6 + $0x294] sm:$0xff]
    %v171 = vld [vmem:[#allocation6 + $0x29c] sm:$0xf]
    %v172 = vld [vmem:[#allocation6 + $0x2a0] sm:$0xff]
    %v173 = vld [vmem:[#allocation6 + $0x2a8] sm:$0xf]
    %v174 = vld [vmem:[#allocation6 + $0x2ac] sm:$0xff]
    %v175 = vld [vmem:[#allocation6 + $0x2b4] sm:$0xf]
    %v176 = vld [vmem:[#allocation6 + $0x2b8] sm:$0xff]
    %v177 = vld [vmem:[#allocation6 + $0x2c0] sm:$0xf]
    %v178 = vld [vmem:[#allocation6 + $0x2c4] sm:$0xff]
    %v179 = vld [vmem:[#allocation6 + $0x2cc] sm:$0xf]
    %v180 = vld [vmem:[#allocation6 + $0x2d0] sm:$0xff]
    %v181 = vld [vmem:[#allocation6 + $0x2d8] sm:$0xf]
    %v182 = vld [vmem:[#allocation6 + $0x2dc] sm:$0xff]
    %v183 = vld [vmem:[#allocation6 + $0x2e4] sm:$0xf]
    %v184 = vld [vmem:[#allocation6 + $0x2e8] sm:$0xff]
    %v185 = vld [vmem:[#allocation6 + $0x2f0] sm:$0xf]
    %v186 = vld [vmem:[#allocation6 + $0x2f4] sm:$0xff]
    %v187 = vld [vmem:[#allocation6 + $0x2fc] sm:$0xf]
    %v188 = vld [vmem:[#allocation6 + $0x300] sm:$0xff]
    %v189 = vld [vmem:[#allocation6 + $0x308] sm:$0xf]
    %v190 = vld [vmem:[#allocation6 + $0x30c] sm:$0xff]
    %v191 = vld [vmem:[#allocation6 + $0x314] sm:$0xf]
    %v192 = vld [vmem:[#allocation6 + $0x318] sm:$0xff]
    %v193 = vld [vmem:[#allocation6 + $0x320] sm:$0xf]
    %v194 = vld [vmem:[#allocation6 + $0x324] sm:$0xff]
    %v195 = vld [vmem:[#allocation6 + $0x32c] sm:$0xf]
    %v196 = vld [vmem:[#allocation6 + $0x330] sm:$0xff]
    %v197 = vld [vmem:[#allocation6 + $0x338] sm:$0xf]
    %v198 = vld [vmem:[#allocation6 + $0x33c] sm:$0xff]
    %v199 = vld [vmem:[#allocation6 + $0x344] sm:$0xf]
    %v200 = vld [vmem:[#allocation6 + $0x348] sm:$0xff]
    %v201 = vld [vmem:[#allocation6 + $0x350] sm:$0xf]
    %v202 = vld [vmem:[#allocation6 + $0x354] sm:$0xff]
    %v203 = vld [vmem:[#allocation6 + $0x35c] sm:$0xf]
    %v204 = vld [vmem:[#allocation6 + $0x360] sm:$0xff]
    %v205 = vld [vmem:[#allocation6 + $0x368] sm:$0xf]
    %v206 = vld [vmem:[#allocation6 + $0x36c] sm:$0xff]
    %v207 = vld [vmem:[#allocation6 + $0x374] sm:$0xf]
    %v208 = vld [vmem:[#allocation6 + $0x378] sm:$0xff]
    %v209 = vld [vmem:[#allocation6 + $0x380] sm:$0xf]
    %v210 = vld [vmem:[#allocation6 + $0x384] sm:$0xff]
    %v211 = vld [vmem:[#allocation6 + $0x38c] sm:$0xf]
    %v212 = vld [vmem:[#allocation6 + $0x390] sm:$0xff]
    %v213 = vld [vmem:[#allocation6 + $0x398] sm:$0xf]
    %v214 = vld [vmem:[#allocation6 + $0x39c] sm:$0xff]
    %v215 = vld [vmem:[#allocation6 + $0x3a4] sm:$0xf]
    %v216 = vld [vmem:[#allocation6 + $0x3a8] sm:$0xff]
    %v217 = vld [vmem:[#allocation6 + $0x3b0] sm:$0xf]
    %v218 = vld [vmem:[#allocation6 + $0x3b4] sm:$0xff]
    %v219 = vld [vmem:[#allocation6 + $0x3bc] sm:$0xf]
    %v220 = vld [vmem:[#allocation6 + $0x3c0] sm:$0xff]
    %v221 = vld [vmem:[#allocation6 + $0x3c8] sm:$0xf]
    %v222 = vld [vmem:[#allocation6 + $0x3cc] sm:$0xff]
    %v223 = vld [vmem:[#allocation6 + $0x3d4] sm:$0xf]
    %v224 = vld [vmem:[#allocation6 + $0x3d8] sm:$0xff]
    %v225 = vld [vmem:[#allocation6 + $0x3e0] sm:$0xf]
    %v226 = vld [vmem:[#allocation6 + $0x3e4] sm:$0xff]
    %v227 = vld [vmem:[#allocation6 + $0x3ec] sm:$0xf]
    %v228 = vld [vmem:[#allocation6 + $0x3f0] sm:$0xff]
    %v229 = vld [vmem:[#allocation6 + $0x3f8] sm:$0xf]
    %v230 = vld [vmem:[#allocation6 + $0x3fc] sm:$0xff]
    %v231 = vld [vmem:[#allocation6 + $0x404] sm:$0xf]
    %v232 = vld [vmem:[#allocation6 + $0x408] sm:$0xff]
    %v233 = vld [vmem:[#allocation6 + $0x410] sm:$0xf]
    %v234 = vld [vmem:[#allocation6 + $0x414] sm:$0xff]
    %v235 = vld [vmem:[#allocation6 + $0x41c] sm:$0xf]
    %v236 = vld [vmem:[#allocation6 + $0x420] sm:$0xff]
    %v237 = vld [vmem:[#allocation6 + $0x428] sm:$0xf]
    %v238 = vld [vmem:[#allocation6 + $0x42c] sm:$0xff]
    %v239 = vld [vmem:[#allocation6 + $0x434] sm:$0xf]
    %v240 = vld [vmem:[#allocation6 + $0x438] sm:$0xff]
    %v241 = vld [vmem:[#allocation6 + $0x440] sm:$0xf]
    %v242 = vld [vmem:[#allocation6 + $0x444] sm:$0xff]
    %v243 = vld [vmem:[#allocation6 + $0x44c] sm:$0xf]
    %v244 = vld [vmem:[#allocation6 + $0x450] sm:$0xff]
    %v245 = vld [vmem:[#allocation6 + $0x458] sm:$0xf]
    %v246 = vld [vmem:[#allocation6 + $0x45c] sm:$0xff]
    %v247 = vld [vmem:[#allocation6 + $0x464] sm:$0xf]
    %v248 = vld [vmem:[#allocation6 + $0x468] sm:$0xff]
    %v249 = vld [vmem:[#allocation6 + $0x470] sm:$0xf]
    %v250 = vld [vmem:[#allocation6 + $0x474] sm:$0xff]
    %v251 = vld [vmem:[#allocation6 + $0x47c] sm:$0xf]
    %v253 = vcombine.high %v59, %v59
    %v255 = vunpack.c.l.s4 1966171168
    %v256 = vunpack.c.0.s8 %v255
    %v257 = vlaneseq
    %v258 = vshrl.u32 %v257, 7
    %v259 = vsub.s32 %v256, %v258
    %v260 = vrot.slane %v59, %v259
    %v262 = vunpack.c.l.s4 1966171168
    %v263 = vunpack.c.0.s8 %v262
    %v264 = vlaneseq
    %v265 = vshrl.u32 %v264, 7
    %v266 = vsub.s32 %v263, %v265
    %v267 = vrot.slane %v253, %v266
    %v268 = vcombine.high %v260, %v260
    %v269 = vcombine.high %v267, %v267
    %v271 = vunpack.c.l.s4 1966171168
    %v272 = vunpack.c.0.s8 %v271
    %v273 = vlaneseq
    %v274 = vshrl.u32 %v273, 7
    %v275 = vsub.s32 %v272, %v274
    %v276 = vrot.slane %v260, %v275
    %v278 = vunpack.c.l.s4 1966171168
    %v279 = vunpack.c.0.s8 %v278
    %v280 = vlaneseq
    %v281 = vshrl.u32 %v280, 7
    %v282 = vsub.s32 %v279, %v281
    %v283 = vrot.slane %v267, %v282
    %v285 = vunpack.c.l.s4 1966171168
    %v286 = vunpack.c.0.s8 %v285
    %v287 = vlaneseq
    %v288 = vshrl.u32 %v287, 7
    %v289 = vsub.s32 %v286, %v288
    %v290 = vrot.slane %v268, %v289
    %v292 = vunpack.c.l.s4 1966171168
    %v293 = vunpack.c.0.s8 %v292
    %v294 = vlaneseq
    %v295 = vshrl.u32 %v294, 7
    %v296 = vsub.s32 %v293, %v295
    %v297 = vrot.slane %v269, %v296
    %v298 = vcombine.high %v276, %v276
    %v299 = vcombine.high %v290, %v290
    %v498 = vunpack.c.l.b16 %v60
    %v499 = vunpack.c.h.b16 %v60
    %v500 = vunpack.c.l.b16 %v61
    %v501 = vunpack.c.l.b16 %v62
    %v502 = vunpack.c.h.b16 %v62
    %v503 = vunpack.c.l.b16 %v63
    %v504 = vunpack.c.l.b16 %v64
    %v505 = vunpack.c.h.b16 %v64
    %v506 = vunpack.c.l.b16 %v65
    %v507 = vunpack.c.l.b16 %v66
    %v508 = vunpack.c.h.b16 %v66
    %v509 = vunpack.c.l.b16 %v67
    %v510 = vunpack.c.l.b16 %v68
    %v511 = vunpack.c.h.b16 %v68
    %v512 = vunpack.c.l.b16 %v69
    %v513 = vunpack.c.l.b16 %v70
    %v514 = vunpack.c.h.b16 %v70
    %v515 = vunpack.c.l.b16 %v71
    %v516 = vunpack.c.l.b16 %v72
    %v517 = vunpack.c.h.b16 %v72
    %v518 = vunpack.c.l.b16 %v73
    %v519 = vunpack.c.l.b16 %v74
    %v520 = vunpack.c.h.b16 %v74
    %v521 = vunpack.c.l.b16 %v75
    %v522 = vunpack.c.l.b16 %v76
    %v523 = vunpack.c.h.b16 %v76
    %v524 = vunpack.c.l.b16 %v77
    %v525 = vunpack.c.l.b16 %v78
    %v526 = vunpack.c.h.b16 %v78
    %v527 = vunpack.c.l.b16 %v79
    %v528 = vunpack.c.l.b16 %v80
    %v529 = vunpack.c.h.b16 %v80
    %v530 = vunpack.c.l.b16 %v81
    %v531 = vunpack.c.l.b16 %v82
    %v532 = vunpack.c.h.b16 %v82
    %v533 = vunpack.c.l.b16 %v83
    %v534 = vunpack.c.l.b16 %v84
    %v535 = vunpack.c.h.b16 %v84
    %v536 = vunpack.c.l.b16 %v85
    %v537 = vunpack.c.l.b16 %v86
    %v538 = vunpack.c.h.b16 %v86
    %v539 = vunpack.c.l.b16 %v87
    %v540 = vunpack.c.l.b16 %v88
    %v541 = vunpack.c.h.b16 %v88
    %v542 = vunpack.c.l.b16 %v89
    %v543 = vunpack.c.l.b16 %v90
    %v544 = vunpack.c.h.b16 %v90
    %v545 = vunpack.c.l.b16 %v91
    %v546 = vunpack.c.l.b16 %v92
    %v547 = vunpack.c.h.b16 %v92
    %v548 = vunpack.c.l.b16 %v93
    %v549 = vunpack.c.l.b16 %v94
    %v550 = vunpack.c.h.b16 %v94
    %v551 = vunpack.c.l.b16 %v95
    %v552 = vunpack.c.l.b16 %v96
    %v553 = vunpack.c.h.b16 %v96
    %v554 = vunpack.c.l.b16 %v97
    %v555 = vunpack.c.l.b16 %v98
    %v556 = vunpack.c.h.b16 %v98
    %v557 = vunpack.c.l.b16 %v99
    %v558 = vunpack.c.l.b16 %v100
    %v559 = vunpack.c.h.b16 %v100
    %v560 = vunpack.c.l.b16 %v101
    %v561 = vunpack.c.l.b16 %v102
    %v562 = vunpack.c.h.b16 %v102
    %v563 = vunpack.c.l.b16 %v103
    %v564 = vunpack.c.l.b16 %v104
    %v565 = vunpack.c.h.b16 %v104
    %v566 = vunpack.c.l.b16 %v105
    %v567 = vunpack.c.l.b16 %v106
    %v568 = vunpack.c.h.b16 %v106
    %v569 = vunpack.c.l.b16 %v107
    %v570 = vunpack.c.l.b16 %v108
    %v571 = vunpack.c.h.b16 %v108
    %v572 = vunpack.c.l.b16 %v109
    %v573 = vunpack.c.l.b16 %v110
    %v574 = vunpack.c.h.b16 %v110
    %v575 = vunpack.c.l.b16 %v111
    %v576 = vunpack.c.l.b16 %v112
    %v577 = vunpack.c.h.b16 %v112
    %v578 = vunpack.c.l.b16 %v113
    %v579 = vunpack.c.l.b16 %v114
    %v580 = vunpack.c.h.b16 %v114
    %v581 = vunpack.c.l.b16 %v115
    %v582 = vunpack.c.l.b16 %v116
    %v583 = vunpack.c.h.b16 %v116
    %v584 = vunpack.c.l.b16 %v117
    %v585 = vunpack.c.l.b16 %v118
    %v586 = vunpack.c.h.b16 %v118
    %v587 = vunpack.c.l.b16 %v119
    %v588 = vunpack.c.l.b16 %v120
    %v589 = vunpack.c.h.b16 %v120
    %v590 = vunpack.c.l.b16 %v121
    %v591 = vunpack.c.l.b16 %v122
    %v592 = vunpack.c.h.b16 %v122
    %v593 = vunpack.c.l.b16 %v123
    %v594 = vunpack.c.l.b16 %v124
    %v595 = vunpack.c.h.b16 %v124
    %v596 = vunpack.c.l.b16 %v125
    %v597 = vunpack.c.l.b16 %v126
    %v598 = vunpack.c.h.b16 %v126
    %v599 = vunpack.c.l.b16 %v127
    %v600 = vunpack.c.l.b16 %v128
    %v601 = vunpack.c.h.b16 %v128
    %v602 = vunpack.c.l.b16 %v129
    %v603 = vunpack.c.l.b16 %v130
    %v604 = vunpack.c.h.b16 %v130
    %v605 = vunpack.c.l.b16 %v131
    %v606 = vunpack.c.l.b16 %v132
    %v607 = vunpack.c.h.b16 %v132
    %v608 = vunpack.c.l.b16 %v133
    %v609 = vunpack.c.l.b16 %v134
    %v610 = vunpack.c.h.b16 %v134
    %v611 = vunpack.c.l.b16 %v135
    %v612 = vunpack.c.l.b16 %v136
    %v613 = vunpack.c.h.b16 %v136
    %v614 = vunpack.c.l.b16 %v137
    %v615 = vunpack.c.l.b16 %v138
    %v616 = vunpack.c.h.b16 %v138
    %v617 = vunpack.c.l.b16 %v139
    %v618 = vunpack.c.l.b16 %v140
    %v619 = vunpack.c.h.b16 %v140
    %v620 = vunpack.c.l.b16 %v141
    %v621 = vunpack.c.l.b16 %v142
    %v622 = vunpack.c.h.b16 %v142
    %v623 = vunpack.c.l.b16 %v143
    %v624 = vunpack.c.l.b16 %v144
    %v625 = vunpack.c.h.b16 %v144
    %v626 = vunpack.c.l.b16 %v145
    %v627 = vunpack.c.l.b16 %v146
    %v628 = vunpack.c.h.b16 %v146
    %v629 = vunpack.c.l.b16 %v147
    %v630 = vunpack.c.l.b16 %v148
    %v631 = vunpack.c.h.b16 %v148
    %v632 = vunpack.c.l.b16 %v149
    %v633 = vunpack.c.l.b16 %v150
    %v634 = vunpack.c.h.b16 %v150
    %v635 = vunpack.c.l.b16 %v151
    %v636 = vunpack.c.l.b16 %v152
    %v637 = vunpack.c.h.b16 %v152
    %v638 = vunpack.c.l.b16 %v153
    %v639 = vunpack.c.l.b16 %v154
    %v640 = vunpack.c.h.b16 %v154
    %v641 = vunpack.c.l.b16 %v155
    %v642 = vunpack.c.l.b16 %v156
    %v643 = vunpack.c.h.b16 %v156
    %v644 = vunpack.c.l.b16 %v157
    %v645 = vunpack.c.l.b16 %v158
    %v646 = vunpack.c.h.b16 %v158
    %v647 = vunpack.c.l.b16 %v159
    %v648 = vunpack.c.l.b16 %v160
    %v649 = vunpack.c.h.b16 %v160
    %v650 = vunpack.c.l.b16 %v161
    %v651 = vunpack.c.l.b16 %v162
    %v652 = vunpack.c.h.b16 %v162
    %v653 = vunpack.c.l.b16 %v163
    %v654 = vunpack.c.l.b16 %v164
    %v655 = vunpack.c.h.b16 %v164
    %v656 = vunpack.c.l.b16 %v165
    %v657 = vunpack.c.l.b16 %v166
    %v658 = vunpack.c.h.b16 %v166
    %v659 = vunpack.c.l.b16 %v167
    %v660 = vunpack.c.l.b16 %v168
    %v661 = vunpack.c.h.b16 %v168
    %v662 = vunpack.c.l.b16 %v169
    %v663 = vunpack.c.l.b16 %v170
    %v664 = vunpack.c.h.b16 %v170
    %v665 = vunpack.c.l.b16 %v171
    %v666 = vunpack.c.l.b16 %v172
    %v667 = vunpack.c.h.b16 %v172
    %v668 = vunpack.c.l.b16 %v173
    %v669 = vunpack.c.l.b16 %v174
    %v670 = vunpack.c.h.b16 %v174
    %v671 = vunpack.c.l.b16 %v175
    %v672 = vunpack.c.l.b16 %v176
    %v673 = vunpack.c.h.b16 %v176
    %v674 = vunpack.c.l.b16 %v177
    %v675 = vunpack.c.l.b16 %v178
    %v676 = vunpack.c.h.b16 %v178
    %v677 = vunpack.c.l.b16 %v179
    %v678 = vunpack.c.l.b16 %v180
    %v679 = vunpack.c.h.b16 %v180
    %v680 = vunpack.c.l.b16 %v181
    %v681 = vunpack.c.l.b16 %v182
    %v682 = vunpack.c.h.b16 %v182
    %v683 = vunpack.c.l.b16 %v183
    %v684 = vunpack.c.l.b16 %v184
    %v685 = vunpack.c.h.b16 %v184
    %v686 = vunpack.c.l.b16 %v185
    %v687 = vunpack.c.l.b16 %v186
    %v688 = vunpack.c.h.b16 %v186
    %v689 = vunpack.c.l.b16 %v187
    %v690 = vunpack.c.l.b16 %v188
    %v691 = vunpack.c.h.b16 %v188
    %v692 = vunpack.c.l.b16 %v189
    %v693 = vunpack.c.l.b16 %v190
    %v694 = vunpack.c.h.b16 %v190
    %v695 = vunpack.c.l.b16 %v191
    %v696 = vunpack.c.l.b16 %v192
    %v697 = vunpack.c.h.b16 %v192
    %v698 = vunpack.c.l.b16 %v193
    %v699 = vunpack.c.l.b16 %v194
    %v700 = vunpack.c.h.b16 %v194
    %v701 = vunpack.c.l.b16 %v195
    %v702 = vunpack.c.l.b16 %v196
    %v703 = vunpack.c.h.b16 %v196
    %v704 = vunpack.c.l.b16 %v197
    %v705 = vunpack.c.l.b16 %v198
    %v706 = vunpack.c.h.b16 %v198
    %v707 = vunpack.c.l.b16 %v199
    %v708 = vunpack.c.l.b16 %v200
    %v709 = vunpack.c.h.b16 %v200
    %v710 = vunpack.c.l.b16 %v201
    %v711 = vunpack.c.l.b16 %v202
    %v712 = vunpack.c.h.b16 %v202
    %v713 = vunpack.c.l.b16 %v203
    %v714 = vunpack.c.l.b16 %v204
    %v715 = vunpack.c.h.b16 %v204
    %v716 = vunpack.c.l.b16 %v205
    %v717 = vunpack.c.l.b16 %v206
    %v718 = vunpack.c.h.b16 %v206
    %v719 = vunpack.c.l.b16 %v207
    %v720 = vunpack.c.l.b16 %v208
    %v721 = vunpack.c.h.b16 %v208
    %v722 = vunpack.c.l.b16 %v209
    %v723 = vunpack.c.l.b16 %v210
    %v724 = vunpack.c.h.b16 %v210
    %v725 = vunpack.c.l.b16 %v211
    %v726 = vunpack.c.l.b16 %v212
    %v727 = vunpack.c.h.b16 %v212
    %v728 = vunpack.c.l.b16 %v213
    %v729 = vunpack.c.l.b16 %v214
    %v730 = vunpack.c.h.b16 %v214
    %v731 = vunpack.c.l.b16 %v215
    %v732 = vunpack.c.l.b16 %v216
    %v733 = vunpack.c.h.b16 %v216
    %v734 = vunpack.c.l.b16 %v217
    %v735 = vunpack.c.l.b16 %v218
    %v736 = vunpack.c.h.b16 %v218
    %v737 = vunpack.c.l.b16 %v219
    %v738 = vunpack.c.l.b16 %v220
    %v739 = vunpack.c.h.b16 %v220
    %v740 = vunpack.c.l.b16 %v221
    %v741 = vunpack.c.l.b16 %v222
    %v742 = vunpack.c.h.b16 %v222
    %v743 = vunpack.c.l.b16 %v223
    %v744 = vunpack.c.l.b16 %v224
    %v745 = vunpack.c.h.b16 %v224
    %v746 = vunpack.c.l.b16 %v225
    %v747 = vunpack.c.l.b16 %v226
    %v748 = vunpack.c.h.b16 %v226
    %v749 = vunpack.c.l.b16 %v227
    %v750 = vunpack.c.l.b16 %v228
    %v751 = vunpack.c.h.b16 %v228
    %v752 = vunpack.c.l.b16 %v229
    %v753 = vunpack.c.l.b16 %v230
    %v754 = vunpack.c.h.b16 %v230
    %v755 = vunpack.c.l.b16 %v231
    %v756 = vunpack.c.l.b16 %v232
    %v757 = vunpack.c.h.b16 %v232
    %v758 = vunpack.c.l.b16 %v233
    %v759 = vunpack.c.l.b16 %v234
    %v760 = vunpack.c.h.b16 %v234
    %v761 = vunpack.c.l.b16 %v235
    %v762 = vunpack.c.l.b16 %v236
    %v763 = vunpack.c.h.b16 %v236
    %v764 = vunpack.c.l.b16 %v237
    %v765 = vunpack.c.l.b16 %v238
    %v766 = vunpack.c.h.b16 %v238
    %v767 = vunpack.c.l.b16 %v239
    %v768 = vunpack.c.l.b16 %v240
    %v769 = vunpack.c.h.b16 %v240
    %v770 = vunpack.c.l.b16 %v241
    %v771 = vunpack.c.l.b16 %v242
    %v772 = vunpack.c.h.b16 %v242
    %v773 = vunpack.c.l.b16 %v243
    %v774 = vunpack.c.l.b16 %v244
    %v775 = vunpack.c.h.b16 %v244
    %v776 = vunpack.c.l.b16 %v245
    %v777 = vunpack.c.l.b16 %v246
    %v778 = vunpack.c.h.b16 %v246
    %v779 = vunpack.c.l.b16 %v247
    %v780 = vunpack.c.l.b16 %v248
    %v781 = vunpack.c.h.b16 %v248
    %v782 = vunpack.c.l.b16 %v249
    %v783 = vunpack.c.l.b16 %v250
    %v784 = vunpack.c.h.b16 %v250
    %v785 = vunpack.c.l.b16 %v251
    %v786 = vpack.c.b16 %v501, %v498
    %v787 = vpack.c.b16 %v502, %v499
    %v788 = vpack.c.b16 %v503, %v500
    %v789 = vpack.c.b16 %v507, %v504
    %v790 = vpack.c.b16 %v508, %v505
    %v791 = vpack.c.b16 %v509, %v506
    %v792 = vpack.c.b16 %v513, %v510
    %v793 = vpack.c.b16 %v514, %v511
    %v794 = vpack.c.b16 %v515, %v512
    %v795 = vpack.c.b16 %v519, %v516
    %v796 = vpack.c.b16 %v520, %v517
    %v797 = vpack.c.b16 %v521, %v518
    %v798 = vpack.c.b16 %v525, %v522
    %v799 = vpack.c.b16 %v526, %v523
    %v800 = vpack.c.b16 %v527, %v524
    %v801 = vpack.c.b16 %v531, %v528
    %v802 = vpack.c.b16 %v532, %v529
    %v803 = vpack.c.b16 %v533, %v530
    %v804 = vpack.c.b16 %v537, %v534
    %v805 = vpack.c.b16 %v538, %v535
    %v806 = vpack.c.b16 %v539, %v536
    %v807 = vpack.c.b16 %v543, %v540
    %v808 = vpack.c.b16 %v544, %v541
    %v809 = vpack.c.b16 %v545, %v542
    %v810 = vpack.c.b16 %v549, %v546
    %v811 = vpack.c.b16 %v550, %v547
    %v812 = vpack.c.b16 %v551, %v548
    %v813 = vpack.c.b16 %v555, %v552
    %v814 = vpack.c.b16 %v556, %v553
    %v815 = vpack.c.b16 %v557, %v554
    %v816 = vpack.c.b16 %v561, %v558
    %v817 = vpack.c.b16 %v562, %v559
    %v818 = vpack.c.b16 %v563, %v560
    %v819 = vpack.c.b16 %v567, %v564
    %v820 = vpack.c.b16 %v568, %v565
    %v821 = vpack.c.b16 %v569, %v566
    %v822 = vpack.c.b16 %v573, %v570
    %v823 = vpack.c.b16 %v574, %v571
    %v824 = vpack.c.b16 %v575, %v572
    %v825 = vpack.c.b16 %v579, %v576
    %v826 = vpack.c.b16 %v580, %v577
    %v827 = vpack.c.b16 %v581, %v578
    %v828 = vpack.c.b16 %v585, %v582
    %v829 = vpack.c.b16 %v586, %v583
    %v830 = vpack.c.b16 %v587, %v584
    %v831 = vpack.c.b16 %v591, %v588
    %v832 = vpack.c.b16 %v592, %v589
    %v833 = vpack.c.b16 %v593, %v590
    %v834 = vpack.c.b16 %v597, %v594
    %v835 = vpack.c.b16 %v598, %v595
    %v836 = vpack.c.b16 %v599, %v596
    %v837 = vpack.c.b16 %v603, %v600
    %v838 = vpack.c.b16 %v604, %v601
    %v839 = vpack.c.b16 %v605, %v602
    %v840 = vpack.c.b16 %v609, %v606
    %v841 = vpack.c.b16 %v610, %v607
    %v842 = vpack.c.b16 %v611, %v608
    %v843 = vpack.c.b16 %v615, %v612
    %v844 = vpack.c.b16 %v616, %v613
    %v845 = vpack.c.b16 %v617, %v614
    %v846 = vpack.c.b16 %v621, %v618
    %v847 = vpack.c.b16 %v622, %v619
    %v848 = vpack.c.b16 %v623, %v620
    %v849 = vpack.c.b16 %v627, %v624
    %v850 = vpack.c.b16 %v628, %v625
    %v851 = vpack.c.b16 %v629, %v626
    %v852 = vpack.c.b16 %v633, %v630
    %v853 = vpack.c.b16 %v634, %v631
    %v854 = vpack.c.b16 %v635, %v632
    %v855 = vpack.c.b16 %v639, %v636
    %v856 = vpack.c.b16 %v640, %v637
    %v857 = vpack.c.b16 %v641, %v638
    %v858 = vpack.c.b16 %v645, %v642
    %v859 = vpack.c.b16 %v646, %v643
    %v860 = vpack.c.b16 %v647, %v644
    %v861 = vpack.c.b16 %v651, %v648
    %v862 = vpack.c.b16 %v652, %v649
    %v863 = vpack.c.b16 %v653, %v650
    %v864 = vpack.c.b16 %v657, %v654
    %v865 = vpack.c.b16 %v658, %v655
    %v866 = vpack.c.b16 %v659, %v656
    %v867 = vpack.c.b16 %v663, %v660
    %v868 = vpack.c.b16 %v664, %v661
    %v869 = vpack.c.b16 %v665, %v662
    %v870 = vpack.c.b16 %v669, %v666
    %v871 = vpack.c.b16 %v670, %v667
    %v872 = vpack.c.b16 %v671, %v668
    %v873 = vpack.c.b16 %v675, %v672
    %v874 = vpack.c.b16 %v676, %v673
    %v875 = vpack.c.b16 %v677, %v674
    %v876 = vpack.c.b16 %v681, %v678
    %v877 = vpack.c.b16 %v682, %v679
    %v878 = vpack.c.b16 %v683, %v680
    %v879 = vpack.c.b16 %v687, %v684
    %v880 = vpack.c.b16 %v688, %v685
    %v881 = vpack.c.b16 %v689, %v686
    %v882 = vpack.c.b16 %v693, %v690
    %v883 = vpack.c.b16 %v694, %v691
    %v884 = vpack.c.b16 %v695, %v692
    %v885 = vpack.c.b16 %v699, %v696
    %v886 = vpack.c.b16 %v700, %v697
    %v887 = vpack.c.b16 %v701, %v698
    %v888 = vpack.c.b16 %v705, %v702
    %v889 = vpack.c.b16 %v706, %v703
    %v890 = vpack.c.b16 %v707, %v704
    %v891 = vpack.c.b16 %v711, %v708
    %v892 = vpack.c.b16 %v712, %v709
    %v893 = vpack.c.b16 %v713, %v710
    %v894 = vpack.c.b16 %v717, %v714
    %v895 = vpack.c.b16 %v718, %v715
    %v896 = vpack.c.b16 %v719, %v716
    %v897 = vpack.c.b16 %v723, %v720
    %v898 = vpack.c.b16 %v724, %v721
    %v899 = vpack.c.b16 %v725, %v722
    %v900 = vpack.c.b16 %v729, %v726
    %v901 = vpack.c.b16 %v730, %v727
    %v902 = vpack.c.b16 %v731, %v728
    %v903 = vpack.c.b16 %v735, %v732
    %v904 = vpack.c.b16 %v736, %v733
    %v905 = vpack.c.b16 %v737, %v734
    %v906 = vpack.c.b16 %v741, %v738
    %v907 = vpack.c.b16 %v742, %v739
    %v908 = vpack.c.b16 %v743, %v740
    %v909 = vpack.c.b16 %v747, %v744
    %v910 = vpack.c.b16 %v748, %v745
    %v911 = vpack.c.b16 %v749, %v746
    %v912 = vpack.c.b16 %v753, %v750
    %v913 = vpack.c.b16 %v754, %v751
    %v914 = vpack.c.b16 %v755, %v752
    %v915 = vpack.c.b16 %v759, %v756
    %v916 = vpack.c.b16 %v760, %v757
    %v917 = vpack.c.b16 %v761, %v758
    %v918 = vpack.c.b16 %v765, %v762
    %v919 = vpack.c.b16 %v766, %v763
    %v920 = vpack.c.b16 %v767, %v764
    %v921 = vpack.c.b16 %v771, %v768
    %v922 = vpack.c.b16 %v772, %v769
    %v923 = vpack.c.b16 %v773, %v770
    %v924 = vpack.c.b16 %v777, %v774
    %v925 = vpack.c.b16 %v778, %v775
    %v926 = vpack.c.b16 %v779, %v776
    %v927 = vpack.c.b16 %v783, %v780
    %v928 = vpack.c.b16 %v784, %v781
    %v929 = vpack.c.b16 %v785, %v782
    %1074 = vmatprep.subr.bf16.mxu0 %v787
    %1075 = vmatpush1.bf16.msra.mxu0 %v786
    %1076 = vmatprep.subr.bf16.mxu0 %v790
    %1077 = vmatpush1.bf16.msra.mxu0 %v789
    %1078 = vmatprep.subr.bf16.mxu0 %v793
    %1079 = vmatpush1.bf16.msra.mxu0 %v792
    %1080 = vmatprep.subr.bf16.mxu0 %v796
    %1081 = vmatpush1.bf16.msra.mxu0 %v795
    %1082 = vmatprep.subr.bf16.mxu0 %v799
    %1083 = vmatpush1.bf16.msra.mxu0 %v798
    %1084 = vmatprep.subr.bf16.mxu0 %v802
    %1085 = vmatpush1.bf16.msra.mxu0 %v801
    %1086 = vmatprep.subr.bf16.mxu0 %v805
    %1087 = vmatpush1.bf16.msra.mxu0 %v804
    %1088 = vmatprep.subr.bf16.mxu0 %v808
    %1089 = vmatpush1.bf16.msra.mxu0 %v807
    %1090 = vmatprep.subr.bf16.mxu0 %v811
    %1091 = vmatpush1.bf16.msra.mxu0 %v810
    %1092 = vmatprep.subr.bf16.mxu0 %v814
    %1093 = vmatpush1.bf16.msra.mxu0 %v813
    %1094 = vmatprep.subr.bf16.mxu0 %v817
    %1095 = vmatpush1.bf16.msra.mxu0 %v816
    %1096 = vmatprep.subr.bf16.mxu0 %v820
    %1097 = vmatpush1.bf16.msra.mxu0 %v819
    %1098 = vmatprep.subr.bf16.mxu0 %v823
    %1099 = vmatpush1.bf16.msra.mxu0 %v822
    %1100 = vmatprep.subr.bf16.mxu0 %v826
    %1101 = vmatpush1.bf16.msra.mxu0 %v825
    %1102 = vmatprep.subr.bf16.mxu0 %v829
    %1103 = vmatpush1.bf16.msra.mxu0 %v828
    %1104 = vmatprep.subr.bf16.mxu0 %v832
    %1105 = vmatpush1.bf16.msra.mxu0 %v831
    %1106 = vmatprep.mubr.bf16.mxu0 %v290
    %1107 = vmatmul.mubr.bf16.gmra.mrb[0].mxu0 %v276
    %v1108 = vpop.f32.mrb[0].mxu0
    %v1109 = vadd.f32 0.0, %v1108
    %v1110 = vpop.f32.mrb[0].mxu0
    %v1111 = vadd.f32 0.0, %v1110
    %v1112 = vpop.f32.mrb[0].mxu0
    %v1113 = vpop.f32.mrb[0].mxu0
    %1114 = vdwg.mxu0
    %1115 = vmatprep.subr.bf16.mxu0 %v835
    %1116 = vmatpush1.bf16.msra.mxu0 %v834
    %1117 = vmatprep.subr.bf16.mxu0 %v838
    %1118 = vmatpush1.bf16.msra.mxu0 %v837
    %1119 = vmatprep.subr.bf16.mxu0 %v841
    %1120 = vmatpush1.bf16.msra.mxu0 %v840
    %1121 = vmatprep.subr.bf16.mxu0 %v844
    %1122 = vmatpush1.bf16.msra.mxu0 %v843
    %1123 = vmatprep.subr.bf16.mxu0 %v847
    %1124 = vmatpush1.bf16.msra.mxu0 %v846
    %1125 = vmatprep.subr.bf16.mxu0 %v850
    %1126 = vmatpush1.bf16.msra.mxu0 %v849
    %1127 = vmatprep.subr.bf16.mxu0 %v853
    %1128 = vmatpush1.bf16.msra.mxu0 %v852
    %1129 = vmatprep.subr.bf16.mxu0 %v856
    %1130 = vmatpush1.bf16.msra.mxu0 %v855
    %1131 = vmatprep.subr.bf16.mxu0 %v859
    %1132 = vmatpush1.bf16.msra.mxu0 %v858
    %1133 = vmatprep.subr.bf16.mxu0 %v862
    %1134 = vmatpush1.bf16.msra.mxu0 %v861
    %1135 = vmatprep.subr.bf16.mxu0 %v865
    %1136 = vmatpush1.bf16.msra.mxu0 %v864
    %1137 = vmatprep.subr.bf16.mxu0 %v868
    %1138 = vmatpush1.bf16.msra.mxu0 %v867
    %1139 = vmatprep.subr.bf16.mxu0 %v871
    %1140 = vmatpush1.bf16.msra.mxu0 %v870
    %1141 = vmatprep.subr.bf16.mxu0 %v874
    %1142 = vmatpush1.bf16.msra.mxu0 %v873
    %1143 = vmatprep.subr.bf16.mxu0 %v877
    %1144 = vmatpush1.bf16.msra.mxu0 %v876
    %1145 = vmatprep.subr.bf16.mxu0 %v880
    %1146 = vmatpush1.bf16.msra.mxu0 %v879
    %1147 = vmatprep.mubr.bf16.mxu0 %v299
    %1148 = vmatmul.mubr.bf16.gmra.mrb[0].mxu0 %v298
    %v1149 = vpop.f32.mrb[0].mxu0
    %v1150 = vadd.f32 %v1109, %v1149
    %v1151 = vpop.f32.mrb[0].mxu0
    %v1152 = vadd.f32 %v1111, %v1151
    %v1153 = vpop.f32.mrb[0].mxu0
    %v1154 = vpop.f32.mrb[0].mxu0
    %1155 = vdwg.mxu0
    %1156 = vmatprep.subr.bf16.mxu0 %v883
    %1157 = vmatpush1.bf16.msra.mxu0 %v882
    %1158 = vmatprep.subr.bf16.mxu0 %v886
    %1159 = vmatpush1.bf16.msra.mxu0 %v885
    %1160 = vmatprep.subr.bf16.mxu0 %v889
    %1161 = vmatpush1.bf16.msra.mxu0 %v888
    %1162 = vmatprep.subr.bf16.mxu0 %v892
    %1163 = vmatpush1.bf16.msra.mxu0 %v891
    %1164 = vmatprep.subr.bf16.mxu0 %v895
    %1165 = vmatpush1.bf16.msra.mxu0 %v894
    %1166 = vmatprep.subr.bf16.mxu0 %v898
    %1167 = vmatpush1.bf16.msra.mxu0 %v897
    %1168 = vmatprep.subr.bf16.mxu0 %v901
    %1169 = vmatpush1.bf16.msra.mxu0 %v900
    %1170 = vmatprep.subr.bf16.mxu0 %v904
    %1171 = vmatpush1.bf16.msra.mxu0 %v903
    %1172 = vmatprep.subr.bf16.mxu0 %v907
    %1173 = vmatpush1.bf16.msra.mxu0 %v906
    %1174 = vmatprep.subr.bf16.mxu0 %v910
    %1175 = vmatpush1.bf16.msra.mxu0 %v909
    %1176 = vmatprep.subr.bf16.mxu0 %v913
    %1177 = vmatpush1.bf16.msra.mxu0 %v912
    %1178 = vmatprep.subr.bf16.mxu0 %v916
    %1179 = vmatpush1.bf16.msra.mxu0 %v915
    %1180 = vmatprep.subr.bf16.mxu0 %v919
    %1181 = vmatpush1.bf16.msra.mxu0 %v918
    %1182 = vmatprep.subr.bf16.mxu0 %v922
    %1183 = vmatpush1.bf16.msra.mxu0 %v921
    %1184 = vmatprep.subr.bf16.mxu0 %v925
    %1185 = vmatpush1.bf16.msra.mxu0 %v924
    %1186 = vmatprep.subr.bf16.mxu0 %v928
    %1187 = vmatpush1.bf16.msra.mxu0 %v927
    %1188 = vmatprep.mubr.bf16.mxu0 %v297
    %1189 = vmatmul.mubr.bf16.gmra.mrb[0].mxu0 %v283
    %v1190 = vpop.f32.mrb[0].mxu0
    %v1191 = vadd.f32 %v1150, %v1190
    %v1192 = vpop.f32.mrb[0].mxu0
    %v1193 = vadd.f32 %v1152, %v1192
    %v1194 = vpop.f32.mrb[0].mxu0
    %v1195 = vpop.f32.mrb[0].mxu0
    %1196 = vdwg.mxu0
    %1197 = vmatprep.subr.bf16.mxu0 0
    %1198 = vmatpush1.bf16.msra.mxu0 %v788
    %1199 = vmatprep.subr.bf16.mxu0 0
    %1200 = vmatpush1.bf16.msra.mxu0 %v791
    %1201 = vmatprep.subr.bf16.mxu0 0
    %1202 = vmatpush1.bf16.msra.mxu0 %v794
    %1203 = vmatprep.subr.bf16.mxu0 0
    %1204 = vmatpush1.bf16.msra.mxu0 %v797
    %1205 = vmatprep.subr.bf16.mxu0 0
    %1206 = vmatpush1.bf16.msra.mxu0 %v800
    %1207 = vmatprep.subr.bf16.mxu0 0
    %1208 = vmatpush1.bf16.msra.mxu0 %v803
    %1209 = vmatprep.subr.bf16.mxu0 0
    %1210 = vmatpush1.bf16.msra.mxu0 %v806
    %1211 = vmatprep.subr.bf16.mxu0 0
    %1212 = vmatpush1.bf16.msra.mxu0 %v809
    %1213 = vmatprep.subr.bf16.mxu0 0
    %1214 = vmatpush1.bf16.msra.mxu0 %v812
    %1215 = vmatprep.subr.bf16.mxu0 0
    %1216 = vmatpush1.bf16.msra.mxu0 %v815
    %1217 = vmatprep.subr.bf16.mxu0 0
    %1218 = vmatpush1.bf16.msra.mxu0 %v818
    %1219 = vmatprep.subr.bf16.mxu0 0
    %1220 = vmatpush1.bf16.msra.mxu0 %v821
    %1221 = vmatprep.subr.bf16.mxu0 0
    %1222 = vmatpush1.bf16.msra.mxu0 %v824
    %1223 = vmatprep.subr.bf16.mxu0 0
    %1224 = vmatpush1.bf16.msra.mxu0 %v827
    %1225 = vmatprep.subr.bf16.mxu0 0
    %1226 = vmatpush1.bf16.msra.mxu0 %v830
    %1227 = vmatprep.subr.bf16.mxu0 0
    %1228 = vmatpush1.bf16.msra.mxu0 %v833
    %1229 = vmatprep.mubr.bf16.mxu0 %v290
    %1230 = vmatmul.mubr.bf16.gmra.mrb[0].mxu0 %v276
    %v1231 = vpop.f32.mrb[0].mxu0
    %v1232 = vadd.f32 0.0, %v1231
    %v1233 = vpop.f32.mrb[0].mxu0
    %v1234 = vpop.f32.mrb[0].mxu0
    %v1235 = vpop.f32.mrb[0].mxu0
    %1236 = vdwg.mxu0
    %1237 = vmatprep.subr.bf16.mxu0 0
    %1238 = vmatpush1.bf16.msra.mxu0 %v836
    %1239 = vmatprep.subr.bf16.mxu0 0
    %1240 = vmatpush1.bf16.msra.mxu0 %v839
    %1241 = vmatprep.subr.bf16.mxu0 0
    %1242 = vmatpush1.bf16.msra.mxu0 %v842
    %1243 = vmatprep.subr.bf16.mxu0 0
    %1244 = vmatpush1.bf16.msra.mxu0 %v845
    %1245 = vmatprep.subr.bf16.mxu0 0
    %1246 = vmatpush1.bf16.msra.mxu0 %v848
    %1247 = vmatprep.subr.bf16.mxu0 0
    %1248 = vmatpush1.bf16.msra.mxu0 %v851
    %1249 = vmatprep.subr.bf16.mxu0 0
    %1250 = vmatpush1.bf16.msra.mxu0 %v854
    %1251 = vmatprep.subr.bf16.mxu0 0
    %1252 = vmatpush1.bf16.msra.mxu0 %v857
    %1253 = vmatprep.subr.bf16.mxu0 0
    %1254 = vmatpush1.bf16.msra.mxu0 %v860
    %1255 = vmatprep.subr.bf16.mxu0 0
    %1256 = vmatpush1.bf16.msra.mxu0 %v863
    %1257 = vmatprep.subr.bf16.mxu0 0
    %1258 = vmatpush1.bf16.msra.mxu0 %v866
    %1259 = vmatprep.subr.bf16.mxu0 0
    %1260 = vmatpush1.bf16.msra.mxu0 %v869
    %1261 = vmatprep.subr.bf16.mxu0 0
    %1262 = vmatpush1.bf16.msra.mxu0 %v872
    %1263 = vmatprep.subr.bf16.mxu0 0
    %1264 = vmatpush1.bf16.msra.mxu0 %v875
    %1265 = vmatprep.subr.bf16.mxu0 0
    %1266 = vmatpush1.bf16.msra.mxu0 %v878
    %1267 = vmatprep.subr.bf16.mxu0 0
    %1268 = vmatpush1.bf16.msra.mxu0 %v881
    %1269 = vmatprep.mubr.bf16.mxu0 %v299
    %1270 = vmatmul.mubr.bf16.gmra.mrb[0].mxu0 %v298
    %v1271 = vpop.f32.mrb[0].mxu0
    %v1272 = vadd.f32 %v1232, %v1271
    %v1273 = vpop.f32.mrb[0].mxu0
    %v1274 = vpop.f32.mrb[0].mxu0
    %v1275 = vpop.f32.mrb[0].mxu0
    %1276 = vdwg.mxu0
    %1277 = vmatprep.subr.bf16.mxu0 0
    %1278 = vmatpush1.bf16.msra.mxu0 %v884
    %1279 = vmatprep.subr.bf16.mxu0 0
    %1280 = vmatpush1.bf16.msra.mxu0 %v887
    %1281 = vmatprep.subr.bf16.mxu0 0
    %1282 = vmatpush1.bf16.msra.mxu0 %v890
    %1283 = vmatprep.subr.bf16.mxu0 0
    %1284 = vmatpush1.bf16.msra.mxu0 %v893
    %1285 = vmatprep.subr.bf16.mxu0 0
    %1286 = vmatpush1.bf16.msra.mxu0 %v896
    %1287 = vmatprep.subr.bf16.mxu0 0
    %1288 = vmatpush1.bf16.msra.mxu0 %v899
    %1289 = vmatprep.subr.bf16.mxu0 0
    %1290 = vmatpush1.bf16.msra.mxu0 %v902
    %1291 = vmatprep.subr.bf16.mxu0 0
    %1292 = vmatpush1.bf16.msra.mxu0 %v905
    %1293 = vmatprep.subr.bf16.mxu0 0
    %1294 = vmatpush1.bf16.msra.mxu0 %v908
    %1295 = vmatprep.subr.bf16.mxu0 0
    %1296 = vmatpush1.bf16.msra.mxu0 %v911
    %1297 = vmatprep.subr.bf16.mxu0 0
    %1298 = vmatpush1.bf16.msra.mxu0 %v914
    %1299 = vmatprep.subr.bf16.mxu0 0
    %1300 = vmatpush1.bf16.msra.mxu0 %v917
    %1301 = vmatprep.subr.bf16.mxu0 0
    %1302 = vmatpush1.bf16.msra.mxu0 %v920
    %1303 = vmatprep.subr.bf16.mxu0 0
    %1304 = vmatpush1.bf16.msra.mxu0 %v923
    %1305 = vmatprep.subr.bf16.mxu0 0
    %1306 = vmatpush1.bf16.msra.mxu0 %v926
    %1307 = vmatprep.subr.bf16.mxu0 0
    %1308 = vmatpush1.bf16.msra.mxu0 %v929
    %1309 = vmatprep.mubr.bf16.mxu0 %v297
    %1310 = vmatmul.mubr.bf16.gmra.mrb[0].mxu0 %v283
    %v1311 = vpop.f32.mrb[0].mxu0
    %v1312 = vadd.f32 %v1272, %v1311
    %v1313 = vpop.f32.mrb[0].mxu0
    %v1314 = vpop.f32.mrb[0].mxu0
    %v1315 = vpop.f32.mrb[0].mxu0
    %1316 = vdwg.mxu0
    %v1320 = vcombine.low %v1191, %v1193
    %v1322 = vunpack.c.l.s4 1983009808
    %v1323 = vunpack.c.0.s8 %v1322
    %v1324 = vlaneseq
    %v1325 = vshrl.u32 %v1324, 7
    %v1326 = vsub.s32 %v1323, %v1325
    %v1327 = vrot.slane %v1320, %v1326
    %v1329 = vunpack.c.l.s4 1983009808
    %v1330 = vunpack.c.0.s8 %v1329
    %v1331 = vlaneseq
    %v1332 = vshrl.u32 %v1331, 7
    %v1333 = vsub.s32 %v1330, %v1332
    %v1334 = vrot.slane %v1312, %v1333
    %v1335 = vcombine.low %v1327, %v1334
    %v1337 = vadd.f32 %v58, %v1335
    %1338 = vst [vmem:[#allocation2] sm:$0x3f] %v1337
    // Predicated region
    $region30: #{model_forward.5} parent=1 // pred_check
      %p1339 = pneg %p53
    $region31: #{model_forward.5} parent=1 // pred_check_branch
      %1341 = sbr.rel (%p1339) target = $region33
    $region32: #{model_forward.5} parent=1 // pred_region
      %v1342 = vld [vmem:[#allocation2] sm:$0x3f]
      %v1343 = vld [vmem:[#allocation8] sm:$0x7]
      %v1345 = vlaneseq
      %v1346 = vshrl.u32 %v1345, 7
      %v1347 = vsub.s32 0, %v1346
      %v1348 = vrot.slane %v1343, %v1347
      %v1349 = vlaneseq
      %v1350 = vshrl.u32 %v1349, 7
      %v1351 = vsub.s32 1, %v1350
      %v1352 = vrot.slane %v1343, %v1351
      %v1353 = vlaneseq
      %v1354 = vshrl.u32 %v1353, 7
      %v1355 = vsub.s32 2, %v1354
      %v1356 = vrot.slane %v1343, %v1355
      %v1357 = vcombine.low %v1348, %v1352
      %v1359 = vunpack.c.l.s4 1983009808
      %v1360 = vunpack.c.0.s8 %v1359
      %v1361 = vlaneseq
      %v1362 = vshrl.u32 %v1361, 7
      %v1363 = vsub.s32 %v1360, %v1362
      %v1364 = vrot.slane %v1357, %v1363
      %v1366 = vunpack.c.l.s4 1983009808
      %v1367 = vunpack.c.0.s8 %v1366
      %v1368 = vlaneseq
      %v1369 = vshrl.u32 %v1368, 7
      %v1370 = vsub.s32 %v1367, %v1369
      %v1371 = vrot.slane %v1356, %v1370
      %v1372 = vcombine.low %v1364, %v1371
      %v1374 = vadd.f32 %v1342, %v1372
      %vm1375 = vcmp.gt.f32.partialorder %v1374, 0.0
      %v1376 = vmin.f32 %v1374, 0.0
      %v1377 = vmul.f32 %v1376, 1.442695
      %v1378 = vpow.pop %v1377
      %v1379 = vsub.f32 %v1378, 1.0
      %v1380 = vsel %vm1375, %v1374, %v1379
      %v1382 = vcombine.high %v1380, %v1380
      %v1384 = vunpack.c.l.s4 1983009808
      %v1385 = vunpack.c.0.s8 %v1384
      %v1386 = vlaneseq
      %v1387 = vshrl.u32 %v1386, 7
      %v1388 = vsub.s32 %v1385, %v1387
      %v1389 = vrot.slane %v1380, %v1388
      %v1391 = vunpack.c.l.s4 1983009808
      %v1392 = vunpack.c.0.s8 %v1391
      %v1393 = vlaneseq
      %v1394 = vshrl.u32 %v1393, 7
      %v1395 = vsub.s32 %v1392, %v1394
      %v1396 = vrot.slane %v1382, %v1395
      %v1397 = vcombine.high %v1389, %v1389
      %v1401 = vpack.c.bf16 %v1389, %v1389
      %v1402 = vpack.c.bf16 %v1397, %v1397
      %v1403 = vpack.c.bf16 %v1396, %v1396
      %v1407 = vcombine.low %v1401, %v1402
      %v1409 = vunpack.c.l.s4 1966171168
      %v1410 = vunpack.c.0.s8 %v1409
      %v1411 = vlaneseq
      %v1412 = vshrl.u32 %v1411, 7
      %v1413 = vsub.s32 %v1410, %v1412
      %v1414 = vrot.slane %v1407, %v1413
      %v1416 = vunpack.c.l.s4 1966171168
      %v1417 = vunpack.c.0.s8 %v1416
      %v1418 = vlaneseq
      %v1419 = vshrl.u32 %v1418, 7
      %v1420 = vsub.s32 %v1417, %v1419
      %v1421 = vrot.slane %v1403, %v1420
      %v1422 = vcombine.low %v1414, %v1421
      %v1424 = vunpack.c.l.s4 1966171168
      %v1425 = vunpack.c.0.s8 %v1424
      %v1426 = vlaneseq
      %v1427 = vshrl.u32 %v1426, 7
      %v1428 = vsub.s32 %v1425, %v1427
      %v1429 = vrot.slane %v1422, %v1428
      %1431 = vst [vmem:[#allocation9] sm:$0x7] %v1429
    $region33: #{model_forward.5} parent=1 // pred_fallthru
      _
    // Predicated region
    $region34: #{model_forward.5} parent=1 // pred_check
      _
    $region35: #{model_forward.5} parent=1 // pred_check_branch
      %1433 = sbr.rel (0) target = $region37
    $region36: #{model_forward.5} parent=1 // pred_region
      %s1435 = ssub.s32 48, 48
      %1436 = vsyncadd [#allocation5], %s1435
      %s1438 = sshll.u32 [#allocation9], 4
      %s1439 = int_to_ptr.vmem [resolvable:$true] %s1438
      %1441 = dma.vmem_to_hbm [thread:$0]  %s1439, 48, %s3, [#allocation5]
    $region37: #{model_forward.5} parent=1 // pred_fallthru
      _
    // Predicated region
    $region38: #{model_forward.5} parent=1 // pred_check
      _
    $region39: #{model_forward.5} parent=1 // pred_check_branch
      %1443 = sbr.rel (0) target = $region41
    $region40: #{model_forward.5} parent=1 // pred_region
      %1444 = dma.done [#allocation5], 48
    $region41: #{model_forward.5} parent=1 // pred_fallthru
      _
    %1445 = vsyncpa [#allocation4], 1
    %1446 = vsyncpa [#allocation7], 1
    %1447 = vsyncpa [#allocation5], 1

</llo_original>
